<compile_context>
chip_gen: v5e
topology: v5e:2x2
jax: 0.10.0
libtpu: 0.0.40
codegen_flags: <defaults>
</compile_context>

<pallas_src>
import numpy as np
import jax
import jax.numpy as jnp
from jax.experimental import pallas as pl
from jax.experimental.pallas import tpu as pltpu


_COMPILER_PARAMS = pltpu.CompilerParams(
    dimension_semantics=("parallel",),          # batch tiles are independent
    vmem_limit_bytes=32 * 1024 * 1024,
)


def _gather_body(idx_ref, x_ref, o_ref, pe_ref=None, init=None):
    """out[t, b, :] = x[idx[t, b], b, :] (+ pe[idx[t, b]]); rows whose index is
    >= x_ref.shape[0] keep `init` (mask token).  Statically-unrolled, fully
    vectorized select chain (VPU only, no scalar reads / dynamic sublane addr)."""
    T_src = x_ref.shape[0]
    idx = idx_ref[0]                                    # (OT, BB, 1) int32
    acc = jnp.zeros(o_ref.shape, o_ref.dtype) if init is None else init
    for s in range(T_src):                              # T_src is small (<= seq_length+1)
        row = x_ref[s]                                  # (BB, C) static slice
        if pe_ref is not None:
            row = row + pe_ref[s]                       # fused source-row pos add, (1,C) bcast
        acc = jnp.where(idx == s, row[None, :, :], acc)
    return acc


def _shuffle_kernel(idx_ref, x_ref, o_ref):
    o_ref[...] = _gather_body(idx_ref, x_ref, o_ref)


def _shuffle_pos_kernel(idx_ref, x_ref, pe_ref, o_ref):
    o_ref[...] = _gather_body(idx_ref, x_ref, o_ref, pe_ref=pe_ref)


def _unshuffle_kernel(idx_ref, f_ref, mtok_ref, pe_ref, o_ref):
    # decoder path: indices >= T_src take the mask token (accumulator init);
    # the decoder positional embedding is a per-output-row add fused at store.
    init = jnp.broadcast_to(mtok_ref[...], o_ref.shape).astype(o_ref.dtype)
    acc = _gather_body(idx_ref, f_ref, o_ref, init=init)
    o_ref[...] = (acc + pe_ref[...]).astype(o_ref.dtype)


def _pick_batch_tile(B, T_src, OT, C, itemsize, vmem_budget=16 * 1024 * 1024):
    """Largest multiple-of-8 batch tile dividing B whose double-buffered in+out
    blocks fit the VMEM budget (block dims == full array dims is the fallback)."""
    per_b = 2 * (T_src + OT) * C * itemsize
    cap = max(1, vmem_budget // max(per_b, 1))
    best = None
    for bb in range(8, min(B, cap) + 1, 8):
        if B % bb == 0:
            best = bb
    if best is None:
        best = 8 if (B % 8 == 0 and B > 8) else B
    return best


def _prep_idx(indexes, G, BB):
    """(OT, B) int -> (G, OT, BB, 1) so each grid step gets a ready VMEM block."""
    OT, _ = indexes.shape
    idx = indexes.astype(jnp.int32).reshape(OT, G, BB)
    return jnp.transpose(idx, (1, 0, 2))[..., None]


def patch_shuffle_pallas(patches, forward_indexes, ratio, pos_embedding=None,
                         batch_tile=None):
    """PatchShuffle: take_indexes(patches [+ pos], forward_indexes)[:remain_T].
    patches (T, B, C); forward_indexes (T, B) int; optional pos (T, 1, C)."""
    T, B, C = patches.shape
    remain_T = int(T * (1 - ratio))                     # matches torch int() floor
    if remain_T == 0:
        return jnp.zeros((0, B, C), patches.dtype)

    BB = batch_tile or _pick_batch_tile(B, T, remain_T, C, patches.dtype.itemsize)
    G = B // BB
    idx = _prep_idx(forward_indexes[:remain_T], G, BB)

    idx_spec = pl.BlockSpec((1, remain_T, BB, 1), lambda g: (g, 0, 0, 0))
    x_spec = pl.BlockSpec((T, BB, C), lambda g: (0, g, 0))
    out_spec = pl.BlockSpec((remain_T, BB, C), lambda g: (0, g, 0))

    if pos_embedding is None:
        kernel, in_specs, args = _shuffle_kernel, [idx_spec, x_spec], (idx, patches)
    else:
        pe = jnp.reshape(pos_embedding, (T, 1, C)).astype(patches.dtype)
        pe_spec = pl.BlockSpec((T, 1, C), lambda g: (0, 0, 0))
        kernel = _shuffle_pos_kernel
        in_specs = [idx_spec, x_spec, pe_spec]
        args = (idx, patches, pe)

    return pl.pallas_call(
        kernel,
        out_shape=jax.ShapeDtypeStruct((remain_T, B, C), patches.dtype),
        grid=(G,),
        in_specs=in_specs,
        out_specs=out_spec,
        compiler_params=_COMPILER_PARAMS,
    )(*args)


def decoder_unshuffle_pallas(features, backward_indexes, mask_token, pos_embedding,
                             batch_tile=None):
    """MAE_Decoder prologue:
         bwd' = cat([zeros(1,B), backward_indexes + 1], 0)
         feat' = cat([features, mask_token.expand(...)], 0)
         out   = take_indexes(feat', bwd') + pos_embedding
    features (T_src, B, C); backward_indexes (seq_length, B);
    mask_token (1,1,C); pos_embedding (seq_length+1, 1, C)."""
    T_src, B, C = features.shape
    T_full = backward_indexes.shape[0]
    OT = T_full + 1

    bwd = backward_indexes.astype(jnp.int32)
    idx_full = jnp.concatenate([jnp.zeros((1, B), jnp.int32), bwd + 1], axis=0)

    BB = batch_tile or _pick_batch_tile(B, T_src, OT, C, features.dtype.itemsize)
    G = B // BB
    idx = _prep_idx(idx_full, G, BB)

    mtok = jnp.reshape(mask_token, (1, 1, C)).astype(features.dtype)
    pe = jnp.reshape(pos_embedding, (OT, 1, C)).astype(features.dtype)

    return pl.pallas_call(
        _unshuffle_kernel,
        out_shape=jax.ShapeDtypeStruct((OT, B, C), features.dtype),
        grid=(G,),
        in_specs=[
            pl.BlockSpec((1, OT, BB, 1), lambda g: (g, 0, 0, 0)),
            pl.BlockSpec((T_src, BB, C), lambda g: (0, g, 0)),
            pl.BlockSpec((1, 1, C), lambda g: (0, 0, 0)),
            pl.BlockSpec((OT, 1, C), lambda g: (0, 0, 0)),
        ],
        out_specs=pl.BlockSpec((OT, BB, C), lambda g: (0, g, 0)),
        compiler_params=_COMPILER_PARAMS,
    )(idx, features, mtok, pe)


class PatchShuffle:
    """JAX/Pallas port of the PyTorch PatchShuffle module (no learnable params)."""

    def __init__(self, ratio):
        self.ratio = ratio

    def __call__(self, patches, key):
        T, B, C = patches.shape
        keys = jax.random.split(key, B)
        fwd = jax.vmap(lambda k: jax.random.permutation(k, T))(keys).T.astype(jnp.int32)
        bwd = jnp.argsort(fwd, axis=0).astype(jnp.int32)
        shuffled = patch_shuffle_pallas(patches, fwd, self.ratio)
        return shuffled, fwd, bwd


if __name__ == "__main__":
    key = jax.random.PRNGKey(0)

    # MAE defaults: seq_length=16, mask_ratio=0.75; C kept small but lane-dense.
    T, B, C, ratio = 16, 16, 128, 0.75
    remain_T = int(T * (1 - ratio))

    key, k_pat, k_perm, k_pos, k_cls, k_mask, k_posd = jax.random.split(key, 7)
    patches = jax.random.normal(k_pat, (T, B, C), jnp.float32)
    pos_enc = 0.02 * jax.random.normal(k_pos, (T, 1, C), jnp.float32)
    cls_tok = 0.02 * jax.random.normal(k_cls, (1, 1, C), jnp.float32)
    mask_tok = 0.02 * jax.random.normal(k_mask, (1, 1, C), jnp.float32)
    pos_dec = 0.02 * jax.random.normal(k_posd, (T + 1, 1, C), jnp.float32)

    # per-batch random permutations (wrapper glue, mirrors np.random.shuffle/argsort)
    keys = jax.random.split(k_perm, B)
    fwd = jax.vmap(lambda k: jax.random.permutation(k, T))(keys).T.astype(jnp.int32)
    bwd = jnp.argsort(fwd, axis=0).astype(jnp.int32)

    # --- encoder path: (patches + pos) shuffled & truncated, pos fused in-kernel ---
    shuffled = jax.block_until_ready(
        patch_shuffle_pallas(patches, fwd, ratio, pos_embedding=pos_enc))
    ref_shuffled = jnp.take_along_axis(patches + pos_enc, fwd[:, :, None], axis=0)[:remain_T]
    assert shuffled.shape == (remain_T, B, C)
    np.testing.assert_allclose(np.asarray(shuffled), np.asarray(ref_shuffled),
                               rtol=1e-6, atol=1e-6)

    # backward indexes really invert the forward permutation
    assert bool(jnp.all(jnp.take_along_axis(fwd, bwd, axis=0) == jnp.arange(T)[:, None]))

    # --- decoder path: re-expand with mask token + decoder pos embedding fused ---
    features = jnp.concatenate([jnp.broadcast_to(cls_tok, (1, B, C)), shuffled], axis=0)
    dec = jax.block_until_ready(
        decoder_unshuffle_pallas(features, bwd, mask_tok, pos_dec))

    idx_full = jnp.concatenate([jnp.zeros((1, B), jnp.int32), bwd + 1], axis=0)
    feat_pad = jnp.concatenate(
        [features, jnp.broadcast_to(mask_tok, (T + 1 - features.shape[0], B, C))], axis=0)
    ref_dec = jnp.take_along_axis(feat_pad, idx_full[:, :, None], axis=0) + pos_dec
    assert dec.shape == (T + 1, B, C)
    np.testing.assert_allclose(np.asarray(dec), np.asarray(ref_dec), rtol=1e-6, atol=1e-6)

    # --- plain PatchShuffle module (no fused pos), plus explicit multi-tile grid ---
    T2, B2, C2, ratio2 = 8, 24, 256, 0.5
    key, k2, kp2 = jax.random.split(key, 3)
    patches2 = jax.random.normal(k2, (T2, B2, C2), jnp.float32)
    module = PatchShuffle(ratio2)
    shuffled2, fwd2, bwd2 = module(patches2, kp2)
    shuffled2 = jax.block_until_ready(shuffled2)
    remain_T2 = int(T2 * (1 - ratio2))
    ref2 = jnp.take_along_axis(patches2, fwd2[:, :, None], axis=0)[:remain_T2]
    assert shuffled2.shape == (remain_T2, B2, C2)
    np.testing.assert_array_equal(np.asarray(shuffled2), np.asarray(ref2))

    shuffled3 = jax.block_until_ready(
        patch_shuffle_pallas(patches2, fwd2, ratio2, batch_tile=8))  # grid = 3
    np.testing.assert_array_equal(np.asarray(shuffled3), np.asarray(ref2))

    print("KERNEL_OK")
</pallas_src>

<mosaic_0001>
module attributes {stable_mosaic.version = 11 : i64} {
  func.func @_shuffle_pos_kernel(%arg0: i32, %arg1: memref<1x4x16x1xi32, #tpu.memory_space<vmem>>, %arg2: memref<16x16x128xf32, #tpu.memory_space<vmem>>, %arg3: memref<16x1x128xf32, #tpu.memory_space<vmem>>, %arg4: memref<4x16x128xf32, #tpu.memory_space<vmem>>) attributes {dimension_semantics = [#tpu.dimension_semantics<parallel>], iteration_bounds = array<i64: 1>, scalar_prefetch = 0 : i64, scratch_operands = 0 : i64, tpu.core_type = #tpu.core_type<tc>, window_params = [{transform_indices = @transform_0, window_bounds = array<i64: 1, 4, 16, 1>}, {transform_indices = @transform_1, window_bounds = array<i64: 16, 16, 128>}, {pipeline_mode = #tpu.pipeline_mode<synchronous>, transform_indices = @transform_2, window_bounds = array<i64: 16, 1, 128>}, {transform_indices = @transform_3, window_bounds = array<i64: 4, 16, 128>}]} {
    %c0 = arith.constant 0 : index
    %c0_0 = arith.constant 0 : index
    %c0_1 = arith.constant 0 : index
    %c0_2 = arith.constant 0 : index
    %0 = vector.load %arg1[%c0, %c0_0, %c0_1, %c0_2] : memref<1x4x16x1xi32, #tpu.memory_space<vmem>>, vector<1x4x16x1xi32>
    %1 = vector.shape_cast %0 : vector<1x4x16x1xi32> to vector<4x16x1xi32>
    %cst = arith.constant 0.000000e+00 : f32
    %2 = vector.broadcast %cst : f32 to vector<4x16x128xf32>
    %c0_3 = arith.constant 0 : index
    %c0_4 = arith.constant 0 : index
    %c0_5 = arith.constant 0 : index
    %3 = vector.load %arg2[%c0_3, %c0_4, %c0_5] : memref<16x16x128xf32, #tpu.memory_space<vmem>>, vector<1x16x128xf32>
    %4 = vector.shape_cast %3 : vector<1x16x128xf32> to vector<16x128xf32>
    %c0_6 = arith.constant 0 : index
    %c0_7 = arith.constant 0 : index
    %c0_8 = arith.constant 0 : index
    %5 = vector.load %arg3[%c0_6, %c0_7, %c0_8] : memref<16x1x128xf32, #tpu.memory_space<vmem>>, vector<1x1x128xf32>
    %6 = vector.shape_cast %5 : vector<1x1x128xf32> to vector<1x128xf32>
    %7 = vector.broadcast %6 : vector<1x128xf32> to vector<16x128xf32>
    %8 = arith.addf %4, %7 : vector<16x128xf32>
    %c0_i32 = arith.constant 0 : i32
    %9 = vector.broadcast %c0_i32 : i32 to vector<4x16x1xi32>
    %10 = arith.cmpi eq, %1, %9 : vector<4x16x1xi32>
    %11 = vector.shape_cast %8 : vector<16x128xf32> to vector<1x16x128xf32>
    %12 = vector.shape_cast %10 : vector<4x16x1xi1> to vector<4x16x1xi1>
    %13 = vector.broadcast %12 : vector<4x16x1xi1> to vector<4x16x128xi1>
    %14 = vector.shape_cast %11 : vector<1x16x128xf32> to vector<1x16x128xf32>
    %15 = vector.broadcast %14 : vector<1x16x128xf32> to vector<4x16x128xf32>
    %16 = arith.select %13, %15, %2 : vector<4x16x128xi1>, vector<4x16x128xf32>
    %c1 = arith.constant 1 : index
    %c0_9 = arith.constant 0 : index
    %c0_10 = arith.constant 0 : index
    %17 = vector.load %arg2[%c1, %c0_9, %c0_10] : memref<16x16x128xf32, #tpu.memory_space<vmem>>, vector<1x16x128xf32>
    %18 = vector.shape_cast %17 : vector<1x16x128xf32> to vector<16x128xf32>
    %c1_11 = arith.constant 1 : index
    %c0_12 = arith.constant 0 : index
    %c0_13 = arith.constant 0 : index
    %19 = vector.load %arg3[%c1_11, %c0_12, %c0_13] : memref<16x1x128xf32, #tpu.memory_space<vmem>>, vector<1x1x128xf32>
    %20 = vector.shape_cast %19 : vector<1x1x128xf32> to vector<1x128xf32>
    %21 = vector.broadcast %20 : vector<1x128xf32> to vector<16x128xf32>
    %22 = arith.addf %18, %21 : vector<16x128xf32>
    %c1_i32 = arith.constant 1 : i32
    %23 = vector.broadcast %c1_i32 : i32 to vector<4x16x1xi32>
    %24 = arith.cmpi eq, %1, %23 : vector<4x16x1xi32>
    %25 = vector.shape_cast %22 : vector<16x128xf32> to vector<1x16x128xf32>
    %26 = vector.shape_cast %24 : vector<4x16x1xi1> to vector<4x16x1xi1>
    %27 = vector.broadcast %26 : vector<4x16x1xi1> to vector<4x16x128xi1>
    %28 = vector.shape_cast %25 : vector<1x16x128xf32> to vector<1x16x128xf32>
    %29 = vector.broadcast %28 : vector<1x16x128xf32> to vector<4x16x128xf32>
    %30 = arith.select %27, %29, %16 : vector<4x16x128xi1>, vector<4x16x128xf32>
    %c2 = arith.constant 2 : index
    %c0_14 = arith.constant 0 : index
    %c0_15 = arith.constant 0 : index
    %31 = vector.load %arg2[%c2, %c0_14, %c0_15] : memref<16x16x128xf32, #tpu.memory_space<vmem>>, vector<1x16x128xf32>
    %32 = vector.shape_cast %31 : vector<1x16x128xf32> to vector<16x128xf32>
    %c2_16 = arith.constant 2 : index
    %c0_17 = arith.constant 0 : index
    %c0_18 = arith.constant 0 : index
    %33 = vector.load %arg3[%c2_16, %c0_17, %c0_18] : memref<16x1x128xf32, #tpu.memory_space<vmem>>, vector<1x1x128xf32>
    %34 = vector.shape_cast %33 : vector<1x1x128xf32> to vector<1x128xf32>
    %35 = vector.broadcast %34 : vector<1x128xf32> to vector<16x128xf32>
    %36 = arith.addf %32, %35 : vector<16x128xf32>
    %c2_i32 = arith.constant 2 : i32
    %37 = vector.broadcast %c2_i32 : i32 to vector<4x16x1xi32>
    %38 = arith.cmpi eq, %1, %37 : vector<4x16x1xi32>
    %39 = vector.shape_cast %36 : vector<16x128xf32> to vector<1x16x128xf32>
    %40 = vector.shape_cast %38 : vector<4x16x1xi1> to vector<4x16x1xi1>
    %41 = vector.broadcast %40 : vector<4x16x1xi1> to vector<4x16x128xi1>
    %42 = vector.shape_cast %39 : vector<1x16x128xf32> to vector<1x16x128xf32>
    %43 = vector.broadcast %42 : vector<1x16x128xf32> to vector<4x16x128xf32>
    %44 = arith.select %41, %43, %30 : vector<4x16x128xi1>, vector<4x16x128xf32>
    %c3 = arith.constant 3 : index
    %c0_19 = arith.constant 0 : index
    %c0_20 = arith.constant 0 : index
    %45 = vector.load %arg2[%c3, %c0_19, %c0_20] : memref<16x16x128xf32, #tpu.memory_space<vmem>>, vector<1x16x128xf32>
    %46 = vector.shape_cast %45 : vector<1x16x128xf32> to vector<16x128xf32>
    %c3_21 = arith.constant 3 : index
    %c0_22 = arith.constant 0 : index
    %c0_23 = arith.constant 0 : index
    %47 = vector.load %arg3[%c3_21, %c0_22, %c0_23] : memref<16x1x128xf32, #tpu.memory_space<vmem>>, vector<1x1x128xf32>
    %48 = vector.shape_cast %47 : vector<1x1x128xf32> to vector<1x128xf32>
    %49 = vector.broadcast %48 : vector<1x128xf32> to vector<16x128xf32>
    %50 = arith.addf %46, %49 : vector<16x128xf32>
    %c3_i32 = arith.constant 3 : i32
    %51 = vector.broadcast %c3_i32 : i32 to vector<4x16x1xi32>
    %52 = arith.cmpi eq, %1, %51 : vector<4x16x1xi32>
    %53 = vector.shape_cast %50 : vector<16x128xf32> to vector<1x16x128xf32>
    %54 = vector.shape_cast %52 : vector<4x16x1xi1> to vector<4x16x1xi1>
    %55 = vector.broadcast %54 : vector<4x16x1xi1> to vector<4x16x128xi1>
    %56 = vector.shape_cast %53 : vector<1x16x128xf32> to vector<1x16x128xf32>
    %57 = vector.broadcast %56 : vector<1x16x128xf32> to vector<4x16x128xf32>
    %58 = arith.select %55, %57, %44 : vector<4x16x128xi1>, vector<4x16x128xf32>
    %c4 = arith.constant 4 : index
    %c0_24 = arith.constant 0 : index
    %c0_25 = arith.constant 0 : index
    %59 = vector.load %arg2[%c4, %c0_24, %c0_25] : memref<16x16x128xf32, #tpu.memory_space<vmem>>, vector<1x16x128xf32>
    %60 = vector.shape_cast %59 : vector<1x16x128xf32> to vector<16x128xf32>
    %c4_26 = arith.constant 4 : index
    %c0_27 = arith.constant 0 : index
    %c0_28 = arith.constant 0 : index
    %61 = vector.load %arg3[%c4_26, %c0_27, %c0_28] : memref<16x1x128xf32, #tpu.memory_space<vmem>>, vector<1x1x128xf32>
    %62 = vector.shape_cast %61 : vector<1x1x128xf32> to vector<1x128xf32>
    %63 = vector.broadcast %62 : vector<1x128xf32> to vector<16x128xf32>
    %64 = arith.addf %60, %63 : vector<16x128xf32>
    %c4_i32 = arith.constant 4 : i32
    %65 = vector.broadcast %c4_i32 : i32 to vector<4x16x1xi32>
    %66 = arith.cmpi eq, %1, %65 : vector<4x16x1xi32>
    %67 = vector.shape_cast %64 : vector<16x128xf32> to vector<1x16x128xf32>
    %68 = vector.shape_cast %66 : vector<4x16x1xi1> to vector<4x16x1xi1>
    %69 = vector.broadcast %68 : vector<4x16x1xi1> to vector<4x16x128xi1>
    %70 = vector.shape_cast %67 : vector<1x16x128xf32> to vector<1x16x128xf32>
    %71 = vector.broadcast %70 : vector<1x16x128xf32> to vector<4x16x128xf32>
    %72 = arith.select %69, %71, %58 : vector<4x16x128xi1>, vector<4x16x128xf32>
    %c5 = arith.constant 5 : index
    %c0_29 = arith.constant 0 : index
    %c0_30 = arith.constant 0 : index
    %73 = vector.load %arg2[%c5, %c0_29, %c0_30] : memref<16x16x128xf32, #tpu.memory_space<vmem>>, vector<1x16x128xf32>
    %74 = vector.shape_cast %73 : vector<1x16x128xf32> to vector<16x128xf32>
    %c5_31 = arith.constant 5 : index
    %c0_32 = arith.constant 0 : index
    %c0_33 = arith.constant 0 : index
    %75 = vector.load %arg3[%c5_31, %c0_32, %c0_33] : memref<16x1x128xf32, #tpu.memory_space<vmem>>, vector<1x1x128xf32>
    %76 = vector.shape_cast %75 : vector<1x1x128xf32> to vector<1x128xf32>
    %77 = vector.broadcast %76 : vector<1x128xf32> to vector<16x128xf32>
    %78 = arith.addf %74, %77 : vector<16x128xf32>
    %c5_i32 = arith.constant 5 : i32
    %79 = vector.broadcast %c5_i32 : i32 to vector<4x16x1xi32>
    %80 = arith.cmpi eq, %1, %79 : vector<4x16x1xi32>
    %81 = vector.shape_cast %78 : vector<16x128xf32> to vector<1x16x128xf32>
    %82 = vector.shape_cast %80 : vector<4x16x1xi1> to vector<4x16x1xi1>
    %83 = vector.broadcast %82 : vector<4x16x1xi1> to vector<4x16x128xi1>
    %84 = vector.shape_cast %81 : vector<1x16x128xf32> to vector<1x16x128xf32>
    %85 = vector.broadcast %84 : vector<1x16x128xf32> to vector<4x16x128xf32>
    %86 = arith.select %83, %85, %72 : vector<4x16x128xi1>, vector<4x16x128xf32>
    %c6 = arith.constant 6 : index
    %c0_34 = arith.constant 0 : index
    %c0_35 = arith.constant 0 : index
    %87 = vector.load %arg2[%c6, %c0_34, %c0_35] : memref<16x16x128xf32, #tpu.memory_space<vmem>>, vector<1x16x128xf32>
    %88 = vector.shape_cast %87 : vector<1x16x128xf32> to vector<16x128xf32>
    %c6_36 = arith.constant 6 : index
    %c0_37 = arith.constant 0 : index
    %c0_38 = arith.constant 0 : index
    %89 = vector.load %arg3[%c6_36, %c0_37, %c0_38] : memref<16x1x128xf32, #tpu.memory_space<vmem>>, vector<1x1x128xf32>
    %90 = vector.shape_cast %89 : vector<1x1x128xf32> to vector<1x128xf32>
    %91 = vector.broadcast %90 : vector<1x128xf32> to vector<16x128xf32>
    %92 = arith.addf %88, %91 : vector<16x128xf32>
    %c6_i32 = arith.constant 6 : i32
    %93 = vector.broadcast %c6_i32 : i32 to vector<4x16x1xi32>
    %94 = arith.cmpi eq, %1, %93 : vector<4x16x1xi32>
    %95 = vector.shape_cast %92 : vector<16x128xf32> to vector<1x16x128xf32>
    %96 = vector.shape_cast %94 : vector<4x16x1xi1> to vector<4x16x1xi1>
    %97 = vector.broadcast %96 : vector<4x16x1xi1> to vector<4x16x128xi1>
    %98 = vector.shape_cast %95 : vector<1x16x128xf32> to vector<1x16x128xf32>
    %99 = vector.broadcast %98 : vector<1x16x128xf32> to vector<4x16x128xf32>
    %100 = arith.select %97, %99, %86 : vector<4x16x128xi1>, vector<4x16x128xf32>
    %c7 = arith.constant 7 : index
    %c0_39 = arith.constant 0 : index
    %c0_40 = arith.constant 0 : index
    %101 = vector.load %arg2[%c7, %c0_39, %c0_40] : memref<16x16x128xf32, #tpu.memory_space<vmem>>, vector<1x16x128xf32>
    %102 = vector.shape_cast %101 : vector<1x16x128xf32> to vector<16x128xf32>
    %c7_41 = arith.constant 7 : index
    %c0_42 = arith.constant 0 : index
    %c0_43 = arith.constant 0 : index
    %103 = vector.load %arg3[%c7_41, %c0_42, %c0_43] : memref<16x1x128xf32, #tpu.memory_space<vmem>>, vector<1x1x128xf32>
    %104 = vector.shape_cast %103 : vector<1x1x128xf32> to vector<1x128xf32>
    %105 = vector.broadcast %104 : vector<1x128xf32> to vector<16x128xf32>
    %106 = arith.addf %102, %105 : vector<16x128xf32>
    %c7_i32 = arith.constant 7 : i32
    %107 = vector.broadcast %c7_i32 : i32 to vector<4x16x1xi32>
    %108 = arith.cmpi eq, %1, %107 : vector<4x16x1xi32>
    %109 = vector.shape_cast %106 : vector<16x128xf32> to vector<1x16x128xf32>
    %110 = vector.shape_cast %108 : vector<4x16x1xi1> to vector<4x16x1xi1>
    %111 = vector.broadcast %110 : vector<4x16x1xi1> to vector<4x16x128xi1>
    %112 = vector.shape_cast %109 : vector<1x16x128xf32> to vector<1x16x128xf32>
    %113 = vector.broadcast %112 : vector<1x16x128xf32> to vector<4x16x128xf32>
    %114 = arith.select %111, %113, %100 : vector<4x16x128xi1>, vector<4x16x128xf32>
    %c8 = arith.constant 8 : index
    %c0_44 = arith.constant 0 : index
    %c0_45 = arith.constant 0 : index
    %115 = vector.load %arg2[%c8, %c0_44, %c0_45] : memref<16x16x128xf32, #tpu.memory_space<vmem>>, vector<1x16x128xf32>
    %116 = vector.shape_cast %115 : vector<1x16x128xf32> to vector<16x128xf32>
    %c8_46 = arith.constant 8 : index
    %c0_47 = arith.constant 0 : index
    %c0_48 = arith.constant 0 : index
    %117 = vector.load %arg3[%c8_46, %c0_47, %c0_48] : memref<16x1x128xf32, #tpu.memory_space<vmem>>, vector<1x1x128xf32>
    %118 = vector.shape_cast %117 : vector<1x1x128xf32> to vector<1x128xf32>
    %119 = vector.broadcast %118 : vector<1x128xf32> to vector<16x128xf32>
    %120 = arith.addf %116, %119 : vector<16x128xf32>
    %c8_i32 = arith.constant 8 : i32
    %121 = vector.broadcast %c8_i32 : i32 to vector<4x16x1xi32>
    %122 = arith.cmpi eq, %1, %121 : vector<4x16x1xi32>
    %123 = vector.shape_cast %120 : vector<16x128xf32> to vector<1x16x128xf32>
    %124 = vector.shape_cast %122 : vector<4x16x1xi1> to vector<4x16x1xi1>
    %125 = vector.broadcast %124 : vector<4x16x1xi1> to vector<4x16x128xi1>
    %126 = vector.shape_cast %123 : vector<1x16x128xf32> to vector<1x16x128xf32>
    %127 = vector.broadcast %126 : vector<1x16x128xf32> to vector<4x16x128xf32>
    %128 = arith.select %125, %127, %114 : vector<4x16x128xi1>, vector<4x16x128xf32>
    %c9 = arith.constant 9 : index
    %c0_49 = arith.constant 0 : index
    %c0_50 = arith.constant 0 : index
    %129 = vector.load %arg2[%c9, %c0_49, %c0_50] : memref<16x16x128xf32, #tpu.memory_space<vmem>>, vector<1x16x128xf32>
    %130 = vector.shape_cast %129 : vector<1x16x128xf32> to vector<16x128xf32>
    %c9_51 = arith.constant 9 : index
    %c0_52 = arith.constant 0 : index
    %c0_53 = arith.constant 0 : index
    %131 = vector.load %arg3[%c9_51, %c0_52, %c0_53] : memref<16x1x128xf32, #tpu.memory_space<vmem>>, vector<1x1x128xf32>
    %132 = vector.shape_cast %131 : vector<1x1x128xf32> to vector<1x128xf32>
    %133 = vector.broadcast %132 : vector<1x128xf32> to vector<16x128xf32>
    %134 = arith.addf %130, %133 : vector<16x128xf32>
    %c9_i32 = arith.constant 9 : i32
    %135 = vector.broadcast %c9_i32 : i32 to vector<4x16x1xi32>
    %136 = arith.cmpi eq, %1, %135 : vector<4x16x1xi32>
    %137 = vector.shape_cast %134 : vector<16x128xf32> to vector<1x16x128xf32>
    %138 = vector.shape_cast %136 : vector<4x16x1xi1> to vector<4x16x1xi1>
    %139 = vector.broadcast %138 : vector<4x16x1xi1> to vector<4x16x128xi1>
    %140 = vector.shape_cast %137 : vector<1x16x128xf32> to vector<1x16x128xf32>
    %141 = vector.broadcast %140 : vector<1x16x128xf32> to vector<4x16x128xf32>
    %142 = arith.select %139, %141, %128 : vector<4x16x128xi1>, vector<4x16x128xf32>
    %c10 = arith.constant 10 : index
    %c0_54 = arith.constant 0 : index
    %c0_55 = arith.constant 0 : index
    %143 = vector.load %arg2[%c10, %c0_54, %c0_55] : memref<16x16x128xf32, #tpu.memory_space<vmem>>, vector<1x16x128xf32>
    %144 = vector.shape_cast %143 : vector<1x16x128xf32> to vector<16x128xf32>
    %c10_56 = arith.constant 10 : index
    %c0_57 = arith.constant 0 : index
    %c0_58 = arith.constant 0 : index
    %145 = vector.load %arg3[%c10_56, %c0_57, %c0_58] : memref<16x1x128xf32, #tpu.memory_space<vmem>>, vector<1x1x128xf32>
    %146 = vector.shape_cast %145 : vector<1x1x128xf32> to vector<1x128xf32>
    %147 = vector.broadcast %146 : vector<1x128xf32> to vector<16x128xf32>
    %148 = arith.addf %144, %147 : vector<16x128xf32>
    %c10_i32 = arith.constant 10 : i32
    %149 = vector.broadcast %c10_i32 : i32 to vector<4x16x1xi32>
    %150 = arith.cmpi eq, %1, %149 : vector<4x16x1xi32>
    %151 = vector.shape_cast %148 : vector<16x128xf32> to vector<1x16x128xf32>
    %152 = vector.shape_cast %150 : vector<4x16x1xi1> to vector<4x16x1xi1>
    %153 = vector.broadcast %152 : vector<4x16x1xi1> to vector<4x16x128xi1>
    %154 = vector.shape_cast %151 : vector<1x16x128xf32> to vector<1x16x128xf32>
    %155 = vector.broadcast %154 : vector<1x16x128xf32> to vector<4x16x128xf32>
    %156 = arith.select %153, %155, %142 : vector<4x16x128xi1>, vector<4x16x128xf32>
    %c11 = arith.constant 11 : index
    %c0_59 = arith.constant 0 : index
    %c0_60 = arith.constant 0 : index
    %157 = vector.load %arg2[%c11, %c0_59, %c0_60] : memref<16x16x128xf32, #tpu.memory_space<vmem>>, vector<1x16x128xf32>
    %158 = vector.shape_cast %157 : vector<1x16x128xf32> to vector<16x128xf32>
    %c11_61 = arith.constant 11 : index
    %c0_62 = arith.constant 0 : index
    %c0_63 = arith.constant 0 : index
    %159 = vector.load %arg3[%c11_61, %c0_62, %c0_63] : memref<16x1x128xf32, #tpu.memory_space<vmem>>, vector<1x1x128xf32>
    %160 = vector.shape_cast %159 : vector<1x1x128xf32> to vector<1x128xf32>
    %161 = vector.broadcast %160 : vector<1x128xf32> to vector<16x128xf32>
    %162 = arith.addf %158, %161 : vector<16x128xf32>
    %c11_i32 = arith.constant 11 : i32
    %163 = vector.broadcast %c11_i32 : i32 to vector<4x16x1xi32>
    %164 = arith.cmpi eq, %1, %163 : vector<4x16x1xi32>
    %165 = vector.shape_cast %162 : vector<16x128xf32> to vector<1x16x128xf32>
    %166 = vector.shape_cast %164 : vector<4x16x1xi1> to vector<4x16x1xi1>
    %167 = vector.broadcast %166 : vector<4x16x1xi1> to vector<4x16x128xi1>
    %168 = vector.shape_cast %165 : vector<1x16x128xf32> to vector<1x16x128xf32>
    %169 = vector.broadcast %168 : vector<1x16x128xf32> to vector<4x16x128xf32>
    %170 = arith.select %167, %169, %156 : vector<4x16x128xi1>, vector<4x16x128xf32>
    %c12 = arith.constant 12 : index
    %c0_64 = arith.constant 0 : index
    %c0_65 = arith.constant 0 : index
    %171 = vector.load %arg2[%c12, %c0_64, %c0_65] : memref<16x16x128xf32, #tpu.memory_space<vmem>>, vector<1x16x128xf32>
    %172 = vector.shape_cast %171 : vector<1x16x128xf32> to vector<16x128xf32>
    %c12_66 = arith.constant 12 : index
    %c0_67 = arith.constant 0 : index
    %c0_68 = arith.constant 0 : index
    %173 = vector.load %arg3[%c12_66, %c0_67, %c0_68] : memref<16x1x128xf32, #tpu.memory_space<vmem>>, vector<1x1x128xf32>
    %174 = vector.shape_cast %173 : vector<1x1x128xf32> to vector<1x128xf32>
    %175 = vector.broadcast %174 : vector<1x128xf32> to vector<16x128xf32>
    %176 = arith.addf %172, %175 : vector<16x128xf32>
    %c12_i32 = arith.constant 12 : i32
    %177 = vector.broadcast %c12_i32 : i32 to vector<4x16x1xi32>
    %178 = arith.cmpi eq, %1, %177 : vector<4x16x1xi32>
    %179 = vector.shape_cast %176 : vector<16x128xf32> to vector<1x16x128xf32>
    %180 = vector.shape_cast %178 : vector<4x16x1xi1> to vector<4x16x1xi1>
    %181 = vector.broadcast %180 : vector<4x16x1xi1> to vector<4x16x128xi1>
    %182 = vector.shape_cast %179 : vector<1x16x128xf32> to vector<1x16x128xf32>
    %183 = vector.broadcast %182 : vector<1x16x128xf32> to vector<4x16x128xf32>
    %184 = arith.select %181, %183, %170 : vector<4x16x128xi1>, vector<4x16x128xf32>
    %c13 = arith.constant 13 : index
    %c0_69 = arith.constant 0 : index
    %c0_70 = arith.constant 0 : index
    %185 = vector.load %arg2[%c13, %c0_69, %c0_70] : memref<16x16x128xf32, #tpu.memory_space<vmem>>, vector<1x16x128xf32>
    %186 = vector.shape_cast %185 : vector<1x16x128xf32> to vector<16x128xf32>
    %c13_71 = arith.constant 13 : index
    %c0_72 = arith.constant 0 : index
    %c0_73 = arith.constant 0 : index
    %187 = vector.load %arg3[%c13_71, %c0_72, %c0_73] : memref<16x1x128xf32, #tpu.memory_space<vmem>>, vector<1x1x128xf32>
    %188 = vector.shape_cast %187 : vector<1x1x128xf32> to vector<1x128xf32>
    %189 = vector.broadcast %188 : vector<1x128xf32> to vector<16x128xf32>
    %190 = arith.addf %186, %189 : vector<16x128xf32>
    %c13_i32 = arith.constant 13 : i32
    %191 = vector.broadcast %c13_i32 : i32 to vector<4x16x1xi32>
    %192 = arith.cmpi eq, %1, %191 : vector<4x16x1xi32>
    %193 = vector.shape_cast %190 : vector<16x128xf32> to vector<1x16x128xf32>
    %194 = vector.shape_cast %192 : vector<4x16x1xi1> to vector<4x16x1xi1>
    %195 = vector.broadcast %194 : vector<4x16x1xi1> to vector<4x16x128xi1>
    %196 = vector.shape_cast %193 : vector<1x16x128xf32> to vector<1x16x128xf32>
    %197 = vector.broadcast %196 : vector<1x16x128xf32> to vector<4x16x128xf32>
    %198 = arith.select %195, %197, %184 : vector<4x16x128xi1>, vector<4x16x128xf32>
    %c14 = arith.constant 14 : index
    %c0_74 = arith.constant 0 : index
    %c0_75 = arith.constant 0 : index
    %199 = vector.load %arg2[%c14, %c0_74, %c0_75] : memref<16x16x128xf32, #tpu.memory_space<vmem>>, vector<1x16x128xf32>
    %200 = vector.shape_cast %199 : vector<1x16x128xf32> to vector<16x128xf32>
    %c14_76 = arith.constant 14 : index
    %c0_77 = arith.constant 0 : index
    %c0_78 = arith.constant 0 : index
    %201 = vector.load %arg3[%c14_76, %c0_77, %c0_78] : memref<16x1x128xf32, #tpu.memory_space<vmem>>, vector<1x1x128xf32>
    %202 = vector.shape_cast %201 : vector<1x1x128xf32> to vector<1x128xf32>
    %203 = vector.broadcast %202 : vector<1x128xf32> to vector<16x128xf32>
    %204 = arith.addf %200, %203 : vector<16x128xf32>
    %c14_i32 = arith.constant 14 : i32
    %205 = vector.broadcast %c14_i32 : i32 to vector<4x16x1xi32>
    %206 = arith.cmpi eq, %1, %205 : vector<4x16x1xi32>
    %207 = vector.shape_cast %204 : vector<16x128xf32> to vector<1x16x128xf32>
    %208 = vector.shape_cast %206 : vector<4x16x1xi1> to vector<4x16x1xi1>
    %209 = vector.broadcast %208 : vector<4x16x1xi1> to vector<4x16x128xi1>
    %210 = vector.shape_cast %207 : vector<1x16x128xf32> to vector<1x16x128xf32>
    %211 = vector.broadcast %210 : vector<1x16x128xf32> to vector<4x16x128xf32>
    %212 = arith.select %209, %211, %198 : vector<4x16x128xi1>, vector<4x16x128xf32>
    %c15 = arith.constant 15 : index
    %c0_79 = arith.constant 0 : index
    %c0_80 = arith.constant 0 : index
    %213 = vector.load %arg2[%c15, %c0_79, %c0_80] : memref<16x16x128xf32, #tpu.memory_space<vmem>>, vector<1x16x128xf32>
    %214 = vector.shape_cast %213 : vector<1x16x128xf32> to vector<16x128xf32>
    %c15_81 = arith.constant 15 : index
    %c0_82 = arith.constant 0 : index
    %c0_83 = arith.constant 0 : index
    %215 = vector.load %arg3[%c15_81, %c0_82, %c0_83] : memref<16x1x128xf32, #tpu.memory_space<vmem>>, vector<1x1x128xf32>
    %216 = vector.shape_cast %215 : vector<1x1x128xf32> to vector<1x128xf32>
    %217 = vector.broadcast %216 : vector<1x128xf32> to vector<16x128xf32>
    %218 = arith.addf %214, %217 : vector<16x128xf32>
    %c15_i32 = arith.constant 15 : i32
    %219 = vector.broadcast %c15_i32 : i32 to vector<4x16x1xi32>
    %220 = arith.cmpi eq, %1, %219 : vector<4x16x1xi32>
    %221 = vector.shape_cast %218 : vector<16x128xf32> to vector<1x16x128xf32>
    %222 = vector.shape_cast %220 : vector<4x16x1xi1> to vector<4x16x1xi1>
    %223 = vector.broadcast %222 : vector<4x16x1xi1> to vector<4x16x128xi1>
    %224 = vector.shape_cast %221 : vector<1x16x128xf32> to vector<1x16x128xf32>
    %225 = vector.broadcast %224 : vector<1x16x128xf32> to vector<4x16x128xf32>
    %226 = arith.select %223, %225, %212 : vector<4x16x128xi1>, vector<4x16x128xf32>
    %c0_84 = arith.constant 0 : index
    %c0_85 = arith.constant 0 : index
    %c0_86 = arith.constant 0 : index
    %227 = vector.load %arg4[%c0_84, %c0_85, %c0_86] : memref<4x16x128xf32, #tpu.memory_space<vmem>>, vector<4x16x128xf32>
    tpu.vector_store %arg4[%c0_84, %c0_85, %c0_86], %226 {strides = array<i32>} : memref<4x16x128xf32, #tpu.memory_space<vmem>>, vector<4x16x128xf32>,
    return
  }
  func.func @transform_0(%arg0: i32) -> (i32, i32, i32, i32) {
    %c0_i32 = arith.constant 0 : i32
    %c0_i32_0 = arith.constant 0 : i32
    %c0_i32_1 = arith.constant 0 : i32
    %c0_i32_2 = arith.constant 0 : i32
    return %arg0, %c0_i32, %c0_i32_0, %c0_i32_1 : i32, i32, i32, i32
  }
  func.func @transform_1(%arg0: i32) -> (i32, i32, i32) {
    %c0_i32 = arith.constant 0 : i32
    %c0_i32_0 = arith.constant 0 : i32
    %c0_i32_1 = arith.constant 0 : i32
    return %c0_i32, %arg0, %c0_i32_0 : i32, i32, i32
  }
  func.func @transform_2(%arg0: i32) -> (i32, i32, i32) {
    %c0_i32 = arith.constant 0 : i32
    %c0_i32_0 = arith.constant 0 : i32
    %c0_i32_1 = arith.constant 0 : i32
    %c0_i32_2 = arith.constant 0 : i32
    return %c0_i32, %c0_i32_0, %c0_i32_1 : i32, i32, i32
  }
  func.func @transform_3(%arg0: i32) -> (i32, i32, i32) {
    %c0_i32 = arith.constant 0 : i32
    %c0_i32_0 = arith.constant 0 : i32
    %c0_i32_1 = arith.constant 0 : i32
    return %c0_i32, %arg0, %c0_i32_0 : i32, i32, i32
  }
}

</mosaic_0001>

<llo_original>
// kernel: tpu_custom_call.1
$region0: #{tpu_custom_call.1}
  #allocation0 [shape = 'u32[]', space=smem, size = 0x4, offset = 0x4, fixed_abs, tag = 'smem constant byte address 0x4 - core index']
  #allocation1 [shape = 'u32[72,128]{1,0:T(1,128)}', space=vmem, size = 0x9000, scoped, tag = 'internal scratch']
  %s0 = inlined_call_operand.vmem [shape: s32[1,4,16,1], index: 0, kind: input, shape index: {}]
  %s1 = inlined_call_operand.hbm [shape: f32[16,16,128], index: 1, kind: input, shape index: {}]
  %s2 = inlined_call_operand.vmem [shape: f32[16,1,128], index: 2, kind: input, shape index: {}]
  %s3 = inlined_call_operand.hbm [shape: f32[4,16,128], index: 3, kind: output, shape index: {}]
  %s4 = sld [smem:[#allocation0]]
  $region26: #{tpu_custom_call.1} parent=0
    _
  %s6 = ssub.s32 1, %s4
  %s7 = scalar_select 0, %s6, %s4
  $region1: #{tpu_custom_call.1} parent=0
    #allocation2 [shape = 'u8[131072]{0}', space=vmem, size = 0x20000, scoped, tag = 'input window, operand 1, single buffered']
    #allocation3 [shape = 's32[1]{0}', space=sflag, size = 0x4, scoped, tag = 'scoped memory for tpu_custom_call.1']
    #allocation4 [shape = 's32[1]{0}', space=sflag, size = 0x4, scoped, tag = 'scoped memory for tpu_custom_call.1']
    #allocation5 [shape = 'u8[32768]{0}', space=vmem, size = 0x8000, scoped, tag = 'output window, operand 0, single buffered']
    %8 = vsyncpa [#allocation3], 0
    %9 = vsyncpa [#allocation4], 0
    // Predicated region
    $region2: #{tpu_custom_call.1} parent=1 // pred_check
      _
    $region3: #{tpu_custom_call.1} parent=1 // pred_check_branch
      %11 = sbr.rel (0) target = $region5
    $region4: #{tpu_custom_call.1} parent=1 // pred_region
      _
    $region5: #{tpu_custom_call.1} parent=1 // pred_fallthru
      _
    // Predicated region
    $region6: #{tpu_custom_call.1} parent=1 // pred_check
      _
    $region7: #{tpu_custom_call.1} parent=1 // pred_check_branch
      %13 = sbr.rel (0) target = $region9
    $region8: #{tpu_custom_call.1} parent=1 // pred_region
      %15 = vsyncadd [#allocation3], 0
      %s16 = sshll.u32 %s1, 4
      %s17 = int_to_ptr.hbm [resolvable:$true] %s16
      %s18 = sshll.u32 [#allocation2], 4
      %s19 = int_to_ptr.vmem [resolvable:$true] %s18
      %24 = dma.hbm_to_vmem [thread:$0]  %s17, 4096, %s19, [#allocation3], 128, 128, 8
    $region9: #{tpu_custom_call.1} parent=1 // pred_fallthru
      _
    // Predicated region
    $region10: #{tpu_custom_call.1} parent=1 // pred_check
      _
    $region11: #{tpu_custom_call.1} parent=1 // pred_check_branch
      %26 = sbr.rel (0) target = $region13
    $region12: #{tpu_custom_call.1} parent=1 // pred_region
      _
    $region13: #{tpu_custom_call.1} parent=1 // pred_fallthru
      _
    // Predicated region
    $region14: #{tpu_custom_call.1} parent=1 // pred_check
      _
    $region15: #{tpu_custom_call.1} parent=1 // pred_check_branch
      %28 = sbr.rel (0) target = $region17
    $region16: #{tpu_custom_call.1} parent=1 // pred_region
      %30 = dma.done [#allocation3], 4096
    $region17: #{tpu_custom_call.1} parent=1 // pred_fallthru
      _
    %v31 = vld [vmem:[%s0] sm:$0xff]
    %v32 = vld [vmem:[%s0 + $0x8] sm:$0xff]
    %v33 = vld [vmem:[%s0 + $0x10] sm:$0xff]
    %v34 = vld [vmem:[%s0 + $0x18] sm:$0xff]
    %v35 = vld [vmem:[%s0 + $0x20] sm:$0xff]
    %v36 = vld [vmem:[%s0 + $0x28] sm:$0xff]
    %v37 = vld [vmem:[%s0 + $0x30] sm:$0xff]
    %v38 = vld [vmem:[%s0 + $0x38] sm:$0xff]
    %v39 = vld [vmem:[#allocation2] sm:$0xff]
    %v40 = vld [vmem:[#allocation2 + $0x8] sm:$0xff]
    %v41 = vld [vmem:[%s2] sm:$0x1]
    %v43 = vperm.slane %v41, 0
    %v45 = vadd.f32 %v39, %v43
    %v46 = vadd.f32 %v40, %v43
    %vm47 = vcmp.eq.s32.totalorder %v31, 0
    %vm48 = vcmp.eq.s32.totalorder %v32, 0
    %vm49 = vcmp.eq.s32.totalorder %v33, 0
    %vm50 = vcmp.eq.s32.totalorder %v34, 0
    %vm51 = vcmp.eq.s32.totalorder %v35, 0
    %vm52 = vcmp.eq.s32.totalorder %v36, 0
    %vm53 = vcmp.eq.s32.totalorder %v37, 0
    %vm54 = vcmp.eq.s32.totalorder %v38, 0
    %v55 = vsel %vm47, 1, 0
    %v56 = vsel %vm48, 1, 0
    %v57 = vsel %vm49, 1, 0
    %v58 = vsel %vm50, 1, 0
    %v59 = vsel %vm51, 1, 0
    %v60 = vsel %vm52, 1, 0
    %v61 = vsel %vm53, 1, 0
    %v62 = vsel %vm54, 1, 0
    %63 = vset.pattern.permute.xlu0 0
    %64 = vperm.xlu0 %63, %v55
    %v65 = vpop.permute.xlu0 %64
    %66 = vset.pattern.permute.xlu0 0
    %67 = vperm.xlu0 %66, %v56
    %v68 = vpop.permute.xlu0 %67
    %69 = vset.pattern.permute.xlu0 0
    %70 = vperm.xlu0 %69, %v57
    %v71 = vpop.permute.xlu0 %70
    %72 = vset.pattern.permute.xlu0 0
    %73 = vperm.xlu0 %72, %v58
    %v74 = vpop.permute.xlu0 %73
    %75 = vset.pattern.permute.xlu0 0
    %76 = vperm.xlu0 %75, %v59
    %v77 = vpop.permute.xlu0 %76
    %78 = vset.pattern.permute.xlu0 0
    %79 = vperm.xlu0 %78, %v60
    %v80 = vpop.permute.xlu0 %79
    %81 = vset.pattern.permute.xlu0 0
    %82 = vperm.xlu0 %81, %v61
    %v83 = vpop.permute.xlu0 %82
    %84 = vset.pattern.permute.xlu0 0
    %85 = vperm.xlu0 %84, %v62
    %v86 = vpop.permute.xlu0 %85
    %vm87 = vcmp.eq.s32.totalorder %v65, 1
    %vm88 = vcmp.eq.s32.totalorder %v68, 1
    %vm89 = vcmp.eq.s32.totalorder %v71, 1
    %vm90 = vcmp.eq.s32.totalorder %v74, 1
    %vm91 = vcmp.eq.s32.totalorder %v77, 1
    %vm92 = vcmp.eq.s32.totalorder %v80, 1
    %vm93 = vcmp.eq.s32.totalorder %v83, 1
    %vm94 = vcmp.eq.s32.totalorder %v86, 1
    %v95 = vsel %vm87, %v45, 0.0
    %v96 = vsel %vm88, %v46, 0.0
    %v97 = vsel %vm89, %v45, 0.0
    %v98 = vsel %vm90, %v46, 0.0
    %v99 = vsel %vm91, %v45, 0.0
    %v100 = vsel %vm92, %v46, 0.0
    %v101 = vsel %vm93, %v45, 0.0
    %v102 = vsel %vm94, %v46, 0.0
    %s103 = scalar_lea.vmem [#allocation2], 16
    %v104 = vld [vmem:[%s103] sm:$0xff]
    %v105 = vld [vmem:[%s103 + $0x8] sm:$0xff]
    %s106 = scalar_lea.vmem %s2, 1
    %v107 = vld [vmem:[%s106] sm:$0x1]
    %v109 = vperm.slane %v107, 0
    %v111 = vadd.f32 %v104, %v109
    %v112 = vadd.f32 %v105, %v109
    %vm113 = vcmp.eq.s32.totalorder %v31, 1
    %vm114 = vcmp.eq.s32.totalorder %v32, 1
    %vm115 = vcmp.eq.s32.totalorder %v33, 1
    %vm116 = vcmp.eq.s32.totalorder %v34, 1
    %vm117 = vcmp.eq.s32.totalorder %v35, 1
    %vm118 = vcmp.eq.s32.totalorder %v36, 1
    %vm119 = vcmp.eq.s32.totalorder %v37, 1
    %vm120 = vcmp.eq.s32.totalorder %v38, 1
    %v121 = vsel %vm113, 1, 0
    %v122 = vsel %vm114, 1, 0
    %v123 = vsel %vm115, 1, 0
    %v124 = vsel %vm116, 1, 0
    %v125 = vsel %vm117, 1, 0
    %v126 = vsel %vm118, 1, 0
    %v127 = vsel %vm119, 1, 0
    %v128 = vsel %vm120, 1, 0
    %129 = vset.pattern.permute.xlu0 0
    %130 = vperm.xlu0 %129, %v121
    %v131 = vpop.permute.xlu0 %130
    %132 = vset.pattern.permute.xlu0 0
    %133 = vperm.xlu0 %132, %v122
    %v134 = vpop.permute.xlu0 %133
    %135 = vset.pattern.permute.xlu0 0
    %136 = vperm.xlu0 %135, %v123
    %v137 = vpop.permute.xlu0 %136
    %138 = vset.pattern.permute.xlu0 0
    %139 = vperm.xlu0 %138, %v124
    %v140 = vpop.permute.xlu0 %139
    %141 = vset.pattern.permute.xlu0 0
    %142 = vperm.xlu0 %141, %v125
    %v143 = vpop.permute.xlu0 %142
    %144 = vset.pattern.permute.xlu0 0
    %145 = vperm.xlu0 %144, %v126
    %v146 = vpop.permute.xlu0 %145
    %147 = vset.pattern.permute.xlu0 0
    %148 = vperm.xlu0 %147, %v127
    %v149 = vpop.permute.xlu0 %148
    %150 = vset.pattern.permute.xlu0 0
    %151 = vperm.xlu0 %150, %v128
    %v152 = vpop.permute.xlu0 %151
    %vm153 = vcmp.eq.s32.totalorder %v131, 1
    %vm154 = vcmp.eq.s32.totalorder %v134, 1
    %vm155 = vcmp.eq.s32.totalorder %v137, 1
    %vm156 = vcmp.eq.s32.totalorder %v140, 1
    %vm157 = vcmp.eq.s32.totalorder %v143, 1
    %vm158 = vcmp.eq.s32.totalorder %v146, 1
    %vm159 = vcmp.eq.s32.totalorder %v149, 1
    %vm160 = vcmp.eq.s32.totalorder %v152, 1
    %v161 = vsel %vm153, %v111, %v95
    %v162 = vsel %vm154, %v112, %v96
    %v163 = vsel %vm155, %v111, %v97
    %v164 = vsel %vm156, %v112, %v98
    %v165 = vsel %vm157, %v111, %v99
    %v166 = vsel %vm158, %v112, %v100
    %v167 = vsel %vm159, %v111, %v101
    %v168 = vsel %vm160, %v112, %v102
    %s169 = scalar_lea.vmem [#allocation2], 32
    %v170 = vld [vmem:[%s169] sm:$0xff]
    %v171 = vld [vmem:[%s169 + $0x8] sm:$0xff]
    %s172 = scalar_lea.vmem %s2, 2
    %v173 = vld [vmem:[%s172] sm:$0x1]
    %v175 = vperm.slane %v173, 0
    %v177 = vadd.f32 %v170, %v175
    %v178 = vadd.f32 %v171, %v175
    %vm179 = vcmp.eq.s32.totalorder %v31, 2
    %vm180 = vcmp.eq.s32.totalorder %v32, 2
    %vm181 = vcmp.eq.s32.totalorder %v33, 2
    %vm182 = vcmp.eq.s32.totalorder %v34, 2
    %vm183 = vcmp.eq.s32.totalorder %v35, 2
    %vm184 = vcmp.eq.s32.totalorder %v36, 2
    %vm185 = vcmp.eq.s32.totalorder %v37, 2
    %vm186 = vcmp.eq.s32.totalorder %v38, 2
    %v187 = vsel %vm179, 1, 0
    %v188 = vsel %vm180, 1, 0
    %v189 = vsel %vm181, 1, 0
    %v190 = vsel %vm182, 1, 0
    %v191 = vsel %vm183, 1, 0
    %v192 = vsel %vm184, 1, 0
    %v193 = vsel %vm185, 1, 0
    %v194 = vsel %vm186, 1, 0
    %195 = vset.pattern.permute.xlu0 0
    %196 = vperm.xlu0 %195, %v187
    %v197 = vpop.permute.xlu0 %196
    %198 = vset.pattern.permute.xlu0 0
    %199 = vperm.xlu0 %198, %v188
    %v200 = vpop.permute.xlu0 %199
    %201 = vset.pattern.permute.xlu0 0
    %202 = vperm.xlu0 %201, %v189
    %v203 = vpop.permute.xlu0 %202
    %204 = vset.pattern.permute.xlu0 0
    %205 = vperm.xlu0 %204, %v190
    %v206 = vpop.permute.xlu0 %205
    %207 = vset.pattern.permute.xlu0 0
    %208 = vperm.xlu0 %207, %v191
    %v209 = vpop.permute.xlu0 %208
    %210 = vset.pattern.permute.xlu0 0
    %211 = vperm.xlu0 %210, %v192
    %v212 = vpop.permute.xlu0 %211
    %213 = vset.pattern.permute.xlu0 0
    %214 = vperm.xlu0 %213, %v193
    %v215 = vpop.permute.xlu0 %214
    %216 = vset.pattern.permute.xlu0 0
    %217 = vperm.xlu0 %216, %v194
    %v218 = vpop.permute.xlu0 %217
    %vm219 = vcmp.eq.s32.totalorder %v197, 1
    %vm220 = vcmp.eq.s32.totalorder %v200, 1
    %vm221 = vcmp.eq.s32.totalorder %v203, 1
    %vm222 = vcmp.eq.s32.totalorder %v206, 1
    %vm223 = vcmp.eq.s32.totalorder %v209, 1
    %vm224 = vcmp.eq.s32.totalorder %v212, 1
    %vm225 = vcmp.eq.s32.totalorder %v215, 1
    %vm226 = vcmp.eq.s32.totalorder %v218, 1
    %v227 = vsel %vm219, %v177, %v161
    %v228 = vsel %vm220, %v178, %v162
    %v229 = vsel %vm221, %v177, %v163
    %v230 = vsel %vm222, %v178, %v164
    %v231 = vsel %vm223, %v177, %v165
    %v232 = vsel %vm224, %v178, %v166
    %v233 = vsel %vm225, %v177, %v167
    %v234 = vsel %vm226, %v178, %v168
    %s235 = scalar_lea.vmem [#allocation2], 48
    %v236 = vld [vmem:[%s235] sm:$0xff]
    %v237 = vld [vmem:[%s235 + $0x8] sm:$0xff]
    %s238 = scalar_lea.vmem %s2, 3
    %v239 = vld [vmem:[%s238] sm:$0x1]
    %v241 = vperm.slane %v239, 0
    %v243 = vadd.f32 %v236, %v241
    %v244 = vadd.f32 %v237, %v241
    %vm245 = vcmp.eq.s32.totalorder %v31, 3
    %vm246 = vcmp.eq.s32.totalorder %v32, 3
    %vm247 = vcmp.eq.s32.totalorder %v33, 3
    %vm248 = vcmp.eq.s32.totalorder %v34, 3
    %vm249 = vcmp.eq.s32.totalorder %v35, 3
    %vm250 = vcmp.eq.s32.totalorder %v36, 3
    %vm251 = vcmp.eq.s32.totalorder %v37, 3
    %vm252 = vcmp.eq.s32.totalorder %v38, 3
    %v253 = vsel %vm245, 1, 0
    %v254 = vsel %vm246, 1, 0
    %v255 = vsel %vm247, 1, 0
    %v256 = vsel %vm248, 1, 0
    %v257 = vsel %vm249, 1, 0
    %v258 = vsel %vm250, 1, 0
    %v259 = vsel %vm251, 1, 0
    %v260 = vsel %vm252, 1, 0
    %261 = vset.pattern.permute.xlu0 0
    %262 = vperm.xlu0 %261, %v253
    %v263 = vpop.permute.xlu0 %262
    %264 = vset.pattern.permute.xlu0 0
    %265 = vperm.xlu0 %264, %v254
    %v266 = vpop.permute.xlu0 %265
    %267 = vset.pattern.permute.xlu0 0
    %268 = vperm.xlu0 %267, %v255
    %v269 = vpop.permute.xlu0 %268
    %270 = vset.pattern.permute.xlu0 0
    %271 = vperm.xlu0 %270, %v256
    %v272 = vpop.permute.xlu0 %271
    %273 = vset.pattern.permute.xlu0 0
    %274 = vperm.xlu0 %273, %v257
    %v275 = vpop.permute.xlu0 %274
    %276 = vset.pattern.permute.xlu0 0
    %277 = vperm.xlu0 %276, %v258
    %v278 = vpop.permute.xlu0 %277
    %279 = vset.pattern.permute.xlu0 0
    %280 = vperm.xlu0 %279, %v259
    %v281 = vpop.permute.xlu0 %280
    %282 = vset.pattern.permute.xlu0 0
    %283 = vperm.xlu0 %282, %v260
    %v284 = vpop.permute.xlu0 %283
    %vm285 = vcmp.eq.s32.totalorder %v263, 1
    %vm286 = vcmp.eq.s32.totalorder %v266, 1
    %vm287 = vcmp.eq.s32.totalorder %v269, 1
    %vm288 = vcmp.eq.s32.totalorder %v272, 1
    %vm289 = vcmp.eq.s32.totalorder %v275, 1
    %vm290 = vcmp.eq.s32.totalorder %v278, 1
    %vm291 = vcmp.eq.s32.totalorder %v281, 1
    %vm292 = vcmp.eq.s32.totalorder %v284, 1
    %v293 = vsel %vm285, %v243, %v227
    %v294 = vsel %vm286, %v244, %v228
    %v295 = vsel %vm287, %v243, %v229
    %v296 = vsel %vm288, %v244, %v230
    %v297 = vsel %vm289, %v243, %v231
    %v298 = vsel %vm290, %v244, %v232
    %v299 = vsel %vm291, %v243, %v233
    %v300 = vsel %vm292, %v244, %v234
    %s301 = scalar_lea.vmem [#allocation2], 64
    %v302 = vld [vmem:[%s301] sm:$0xff]
    %v303 = vld [vmem:[%s301 + $0x8] sm:$0xff]
    %s304 = scalar_lea.vmem %s2, 4
    %v305 = vld [vmem:[%s304] sm:$0x1]
    %v307 = vperm.slane %v305, 0
    %v309 = vadd.f32 %v302, %v307
    %v310 = vadd.f32 %v303, %v307
    %vm311 = vcmp.eq.s32.totalorder %v31, 4
    %vm312 = vcmp.eq.s32.totalorder %v32, 4
    %vm313 = vcmp.eq.s32.totalorder %v33, 4
    %vm314 = vcmp.eq.s32.totalorder %v34, 4
    %vm315 = vcmp.eq.s32.totalorder %v35, 4
    %vm316 = vcmp.eq.s32.totalorder %v36, 4
    %vm317 = vcmp.eq.s32.totalorder %v37, 4
    %vm318 = vcmp.eq.s32.totalorder %v38, 4
    %v319 = vsel %vm311, 1, 0
    %v320 = vsel %vm312, 1, 0
    %v321 = vsel %vm313, 1, 0
    %v322 = vsel %vm314, 1, 0
    %v323 = vsel %vm315, 1, 0
    %v324 = vsel %vm316, 1, 0
    %v325 = vsel %vm317, 1, 0
    %v326 = vsel %vm318, 1, 0
    %327 = vset.pattern.permute.xlu0 0
    %328 = vperm.xlu0 %327, %v319
    %v329 = vpop.permute.xlu0 %328
    %330 = vset.pattern.permute.xlu0 0
    %331 = vperm.xlu0 %330, %v320
    %v332 = vpop.permute.xlu0 %331
    %333 = vset.pattern.permute.xlu0 0
    %334 = vperm.xlu0 %333, %v321
    %v335 = vpop.permute.xlu0 %334
    %336 = vset.pattern.permute.xlu0 0
    %337 = vperm.xlu0 %336, %v322
    %v338 = vpop.permute.xlu0 %337
    %339 = vset.pattern.permute.xlu0 0
    %340 = vperm.xlu0 %339, %v323
    %v341 = vpop.permute.xlu0 %340
    %342 = vset.pattern.permute.xlu0 0
    %343 = vperm.xlu0 %342, %v324
    %v344 = vpop.permute.xlu0 %343
    %345 = vset.pattern.permute.xlu0 0
    %346 = vperm.xlu0 %345, %v325
    %v347 = vpop.permute.xlu0 %346
    %348 = vset.pattern.permute.xlu0 0
    %349 = vperm.xlu0 %348, %v326
    %v350 = vpop.permute.xlu0 %349
    %vm351 = vcmp.eq.s32.totalorder %v329, 1
    %vm352 = vcmp.eq.s32.totalorder %v332, 1
    %vm353 = vcmp.eq.s32.totalorder %v335, 1
    %vm354 = vcmp.eq.s32.totalorder %v338, 1
    %vm355 = vcmp.eq.s32.totalorder %v341, 1
    %vm356 = vcmp.eq.s32.totalorder %v344, 1
    %vm357 = vcmp.eq.s32.totalorder %v347, 1
    %vm358 = vcmp.eq.s32.totalorder %v350, 1
    %v359 = vsel %vm351, %v309, %v293
    %v360 = vsel %vm352, %v310, %v294
    %v361 = vsel %vm353, %v309, %v295
    %v362 = vsel %vm354, %v310, %v296
    %v363 = vsel %vm355, %v309, %v297
    %v364 = vsel %vm356, %v310, %v298
    %v365 = vsel %vm357, %v309, %v299
    %v366 = vsel %vm358, %v310, %v300
    %s367 = scalar_lea.vmem [#allocation2], 80
    %v368 = vld [vmem:[%s367] sm:$0xff]
    %v369 = vld [vmem:[%s367 + $0x8] sm:$0xff]
    %s370 = scalar_lea.vmem %s2, 5
    %v371 = vld [vmem:[%s370] sm:$0x1]
    %v373 = vperm.slane %v371, 0
    %v375 = vadd.f32 %v368, %v373
    %v376 = vadd.f32 %v369, %v373
    %vm377 = vcmp.eq.s32.totalorder %v31, 5
    %vm378 = vcmp.eq.s32.totalorder %v32, 5
    %vm379 = vcmp.eq.s32.totalorder %v33, 5
    %vm380 = vcmp.eq.s32.totalorder %v34, 5
    %vm381 = vcmp.eq.s32.totalorder %v35, 5
    %vm382 = vcmp.eq.s32.totalorder %v36, 5
    %vm383 = vcmp.eq.s32.totalorder %v37, 5
    %vm384 = vcmp.eq.s32.totalorder %v38, 5
    %v385 = vsel %vm377, 1, 0
    %v386 = vsel %vm378, 1, 0
    %v387 = vsel %vm379, 1, 0
    %v388 = vsel %vm380, 1, 0
    %v389 = vsel %vm381, 1, 0
    %v390 = vsel %vm382, 1, 0
    %v391 = vsel %vm383, 1, 0
    %v392 = vsel %vm384, 1, 0
    %393 = vset.pattern.permute.xlu0 0
    %394 = vperm.xlu0 %393, %v385
    %v395 = vpop.permute.xlu0 %394
    %396 = vset.pattern.permute.xlu0 0
    %397 = vperm.xlu0 %396, %v386
    %v398 = vpop.permute.xlu0 %397
    %399 = vset.pattern.permute.xlu0 0
    %400 = vperm.xlu0 %399, %v387
    %v401 = vpop.permute.xlu0 %400
    %402 = vset.pattern.permute.xlu0 0
    %403 = vperm.xlu0 %402, %v388
    %v404 = vpop.permute.xlu0 %403
    %405 = vset.pattern.permute.xlu0 0
    %406 = vperm.xlu0 %405, %v389
    %v407 = vpop.permute.xlu0 %406
    %408 = vset.pattern.permute.xlu0 0
    %409 = vperm.xlu0 %408, %v390
    %v410 = vpop.permute.xlu0 %409
    %411 = vset.pattern.permute.xlu0 0
    %412 = vperm.xlu0 %411, %v391
    %v413 = vpop.permute.xlu0 %412
    %414 = vset.pattern.permute.xlu0 0
    %415 = vperm.xlu0 %414, %v392
    %v416 = vpop.permute.xlu0 %415
    %vm417 = vcmp.eq.s32.totalorder %v395, 1
    %vm418 = vcmp.eq.s32.totalorder %v398, 1
    %vm419 = vcmp.eq.s32.totalorder %v401, 1
    %vm420 = vcmp.eq.s32.totalorder %v404, 1
    %vm421 = vcmp.eq.s32.totalorder %v407, 1
    %vm422 = vcmp.eq.s32.totalorder %v410, 1
    %vm423 = vcmp.eq.s32.totalorder %v413, 1
    %vm424 = vcmp.eq.s32.totalorder %v416, 1
    %v425 = vsel %vm417, %v375, %v359
    %v426 = vsel %vm418, %v376, %v360
    %v427 = vsel %vm419, %v375, %v361
    %v428 = vsel %vm420, %v376, %v362
    %v429 = vsel %vm421, %v375, %v363
    %v430 = vsel %vm422, %v376, %v364
    %v431 = vsel %vm423, %v375, %v365
    %v432 = vsel %vm424, %v376, %v366
    %s433 = scalar_lea.vmem [#allocation2], 96
    %v434 = vld [vmem:[%s433] sm:$0xff]
    %v435 = vld [vmem:[%s433 + $0x8] sm:$0xff]
    %s436 = scalar_lea.vmem %s2, 6
    %v437 = vld [vmem:[%s436] sm:$0x1]
    %v439 = vperm.slane %v437, 0
    %v441 = vadd.f32 %v434, %v439
    %v442 = vadd.f32 %v435, %v439
    %vm443 = vcmp.eq.s32.totalorder %v31, 6
    %vm444 = vcmp.eq.s32.totalorder %v32, 6
    %vm445 = vcmp.eq.s32.totalorder %v33, 6
    %vm446 = vcmp.eq.s32.totalorder %v34, 6
    %vm447 = vcmp.eq.s32.totalorder %v35, 6
    %vm448 = vcmp.eq.s32.totalorder %v36, 6
    %vm449 = vcmp.eq.s32.totalorder %v37, 6
    %vm450 = vcmp.eq.s32.totalorder %v38, 6
    %v451 = vsel %vm443, 1, 0
    %v452 = vsel %vm444, 1, 0
    %v453 = vsel %vm445, 1, 0
    %v454 = vsel %vm446, 1, 0
    %v455 = vsel %vm447, 1, 0
    %v456 = vsel %vm448, 1, 0
    %v457 = vsel %vm449, 1, 0
    %v458 = vsel %vm450, 1, 0
    %459 = vset.pattern.permute.xlu0 0
    %460 = vperm.xlu0 %459, %v451
    %v461 = vpop.permute.xlu0 %460
    %462 = vset.pattern.permute.xlu0 0
    %463 = vperm.xlu0 %462, %v452
    %v464 = vpop.permute.xlu0 %463
    %465 = vset.pattern.permute.xlu0 0
    %466 = vperm.xlu0 %465, %v453
    %v467 = vpop.permute.xlu0 %466
    %468 = vset.pattern.permute.xlu0 0
    %469 = vperm.xlu0 %468, %v454
    %v470 = vpop.permute.xlu0 %469
    %471 = vset.pattern.permute.xlu0 0
    %472 = vperm.xlu0 %471, %v455
    %v473 = vpop.permute.xlu0 %472
    %474 = vset.pattern.permute.xlu0 0
    %475 = vperm.xlu0 %474, %v456
    %v476 = vpop.permute.xlu0 %475
    %477 = vset.pattern.permute.xlu0 0
    %478 = vperm.xlu0 %477, %v457
    %v479 = vpop.permute.xlu0 %478
    %480 = vset.pattern.permute.xlu0 0
    %481 = vperm.xlu0 %480, %v458
    %v482 = vpop.permute.xlu0 %481
    %vm483 = vcmp.eq.s32.totalorder %v461, 1
    %vm484 = vcmp.eq.s32.totalorder %v464, 1
    %vm485 = vcmp.eq.s32.totalorder %v467, 1
    %vm486 = vcmp.eq.s32.totalorder %v470, 1
    %vm487 = vcmp.eq.s32.totalorder %v473, 1
    %vm488 = vcmp.eq.s32.totalorder %v476, 1
    %vm489 = vcmp.eq.s32.totalorder %v479, 1
    %vm490 = vcmp.eq.s32.totalorder %v482, 1
    %v491 = vsel %vm483, %v441, %v425
    %v492 = vsel %vm484, %v442, %v426
    %v493 = vsel %vm485, %v441, %v427
    %v494 = vsel %vm486, %v442, %v428
    %v495 = vsel %vm487, %v441, %v429
    %v496 = vsel %vm488, %v442, %v430
    %v497 = vsel %vm489, %v441, %v431
    %v498 = vsel %vm490, %v442, %v432
    %s499 = scalar_lea.vmem [#allocation2], 112
    %v500 = vld [vmem:[%s499] sm:$0xff]
    %v501 = vld [vmem:[%s499 + $0x8] sm:$0xff]
    %s502 = scalar_lea.vmem %s2, 7
    %v503 = vld [vmem:[%s502] sm:$0x1]
    %v505 = vperm.slane %v503, 0
    %v507 = vadd.f32 %v500, %v505
    %v508 = vadd.f32 %v501, %v505
    %vm509 = vcmp.eq.s32.totalorder %v31, 7
    %vm510 = vcmp.eq.s32.totalorder %v32, 7
    %vm511 = vcmp.eq.s32.totalorder %v33, 7
    %vm512 = vcmp.eq.s32.totalorder %v34, 7
    %vm513 = vcmp.eq.s32.totalorder %v35, 7
    %vm514 = vcmp.eq.s32.totalorder %v36, 7
    %vm515 = vcmp.eq.s32.totalorder %v37, 7
    %vm516 = vcmp.eq.s32.totalorder %v38, 7
    %v517 = vsel %vm509, 1, 0
    %v518 = vsel %vm510, 1, 0
    %v519 = vsel %vm511, 1, 0
    %v520 = vsel %vm512, 1, 0
    %v521 = vsel %vm513, 1, 0
    %v522 = vsel %vm514, 1, 0
    %v523 = vsel %vm515, 1, 0
    %v524 = vsel %vm516, 1, 0
    %525 = vset.pattern.permute.xlu0 0
    %526 = vperm.xlu0 %525, %v517
    %v527 = vpop.permute.xlu0 %526
    %528 = vset.pattern.permute.xlu0 0
    %529 = vperm.xlu0 %528, %v518
    %v530 = vpop.permute.xlu0 %529
    %531 = vset.pattern.permute.xlu0 0
    %532 = vperm.xlu0 %531, %v519
    %v533 = vpop.permute.xlu0 %532
    %534 = vset.pattern.permute.xlu0 0
    %535 = vperm.xlu0 %534, %v520
    %v536 = vpop.permute.xlu0 %535
    %537 = vset.pattern.permute.xlu0 0
    %538 = vperm.xlu0 %537, %v521
    %v539 = vpop.permute.xlu0 %538
    %540 = vset.pattern.permute.xlu0 0
    %541 = vperm.xlu0 %540, %v522
    %v542 = vpop.permute.xlu0 %541
    %543 = vset.pattern.permute.xlu0 0
    %544 = vperm.xlu0 %543, %v523
    %v545 = vpop.permute.xlu0 %544
    %546 = vset.pattern.permute.xlu0 0
    %547 = vperm.xlu0 %546, %v524
    %v548 = vpop.permute.xlu0 %547
    %vm549 = vcmp.eq.s32.totalorder %v527, 1
    %vm550 = vcmp.eq.s32.totalorder %v530, 1
    %vm551 = vcmp.eq.s32.totalorder %v533, 1
    %vm552 = vcmp.eq.s32.totalorder %v536, 1
    %vm553 = vcmp.eq.s32.totalorder %v539, 1
    %vm554 = vcmp.eq.s32.totalorder %v542, 1
    %vm555 = vcmp.eq.s32.totalorder %v545, 1
    %vm556 = vcmp.eq.s32.totalorder %v548, 1
    %v557 = vsel %vm549, %v507, %v491
    %v558 = vsel %vm550, %v508, %v492
    %v559 = vsel %vm551, %v507, %v493
    %v560 = vsel %vm552, %v508, %v494
    %v561 = vsel %vm553, %v507, %v495
    %v562 = vsel %vm554, %v508, %v496
    %v563 = vsel %vm555, %v507, %v497
    %v564 = vsel %vm556, %v508, %v498
    %s565 = scalar_lea.vmem [#allocation2], 128
    %v566 = vld [vmem:[%s565] sm:$0xff]
    %v567 = vld [vmem:[%s565 + $0x8] sm:$0xff]
    %s568 = scalar_lea.vmem %s2, 8
    %v569 = vld [vmem:[%s568] sm:$0x1]
    %v571 = vperm.slane %v569, 0
    %v573 = vadd.f32 %v566, %v571
    %v574 = vadd.f32 %v567, %v571
    %vm575 = vcmp.eq.s32.totalorder %v31, 8
    %vm576 = vcmp.eq.s32.totalorder %v32, 8
    %vm577 = vcmp.eq.s32.totalorder %v33, 8
    %vm578 = vcmp.eq.s32.totalorder %v34, 8
    %vm579 = vcmp.eq.s32.totalorder %v35, 8
    %vm580 = vcmp.eq.s32.totalorder %v36, 8
    %vm581 = vcmp.eq.s32.totalorder %v37, 8
    %vm582 = vcmp.eq.s32.totalorder %v38, 8
    %v583 = vsel %vm575, 1, 0
    %v584 = vsel %vm576, 1, 0
    %v585 = vsel %vm577, 1, 0
    %v586 = vsel %vm578, 1, 0
    %v587 = vsel %vm579, 1, 0
    %v588 = vsel %vm580, 1, 0
    %v589 = vsel %vm581, 1, 0
    %v590 = vsel %vm582, 1, 0
    %591 = vset.pattern.permute.xlu0 0
    %592 = vperm.xlu0 %591, %v583
    %v593 = vpop.permute.xlu0 %592
    %594 = vset.pattern.permute.xlu0 0
    %595 = vperm.xlu0 %594, %v584
    %v596 = vpop.permute.xlu0 %595
    %597 = vset.pattern.permute.xlu0 0
    %598 = vperm.xlu0 %597, %v585
    %v599 = vpop.permute.xlu0 %598
    %600 = vset.pattern.permute.xlu0 0
    %601 = vperm.xlu0 %600, %v586
    %v602 = vpop.permute.xlu0 %601
    %603 = vset.pattern.permute.xlu0 0
    %604 = vperm.xlu0 %603, %v587
    %v605 = vpop.permute.xlu0 %604
    %606 = vset.pattern.permute.xlu0 0
    %607 = vperm.xlu0 %606, %v588
    %v608 = vpop.permute.xlu0 %607
    %609 = vset.pattern.permute.xlu0 0
    %610 = vperm.xlu0 %609, %v589
    %v611 = vpop.permute.xlu0 %610
    %612 = vset.pattern.permute.xlu0 0
    %613 = vperm.xlu0 %612, %v590
    %v614 = vpop.permute.xlu0 %613
    %vm615 = vcmp.eq.s32.totalorder %v593, 1
    %vm616 = vcmp.eq.s32.totalorder %v596, 1
    %vm617 = vcmp.eq.s32.totalorder %v599, 1
    %vm618 = vcmp.eq.s32.totalorder %v602, 1
    %vm619 = vcmp.eq.s32.totalorder %v605, 1
    %vm620 = vcmp.eq.s32.totalorder %v608, 1
    %vm621 = vcmp.eq.s32.totalorder %v611, 1
    %vm622 = vcmp.eq.s32.totalorder %v614, 1
    %v623 = vsel %vm615, %v573, %v557
    %v624 = vsel %vm616, %v574, %v558
    %v625 = vsel %vm617, %v573, %v559
    %v626 = vsel %vm618, %v574, %v560
    %v627 = vsel %vm619, %v573, %v561
    %v628 = vsel %vm620, %v574, %v562
    %v629 = vsel %vm621, %v573, %v563
    %v630 = vsel %vm622, %v574, %v564
    %s631 = scalar_lea.vmem [#allocation2], 144
    %v632 = vld [vmem:[%s631] sm:$0xff]
    %v633 = vld [vmem:[%s631 + $0x8] sm:$0xff]
    %s634 = scalar_lea.vmem %s2, 9
    %v635 = vld [vmem:[%s634] sm:$0x1]
    %v637 = vperm.slane %v635, 0
    %v639 = vadd.f32 %v632, %v637
    %v640 = vadd.f32 %v633, %v637
    %vm641 = vcmp.eq.s32.totalorder %v31, 9
    %vm642 = vcmp.eq.s32.totalorder %v32, 9
    %vm643 = vcmp.eq.s32.totalorder %v33, 9
    %vm644 = vcmp.eq.s32.totalorder %v34, 9
    %vm645 = vcmp.eq.s32.totalorder %v35, 9
    %vm646 = vcmp.eq.s32.totalorder %v36, 9
    %vm647 = vcmp.eq.s32.totalorder %v37, 9
    %vm648 = vcmp.eq.s32.totalorder %v38, 9
    %v649 = vsel %vm641, 1, 0
    %v650 = vsel %vm642, 1, 0
    %v651 = vsel %vm643, 1, 0
    %v652 = vsel %vm644, 1, 0
    %v653 = vsel %vm645, 1, 0
    %v654 = vsel %vm646, 1, 0
    %v655 = vsel %vm647, 1, 0
    %v656 = vsel %vm648, 1, 0
    %657 = vset.pattern.permute.xlu0 0
    %658 = vperm.xlu0 %657, %v649
    %v659 = vpop.permute.xlu0 %658
    %660 = vset.pattern.permute.xlu0 0
    %661 = vperm.xlu0 %660, %v650
    %v662 = vpop.permute.xlu0 %661
    %663 = vset.pattern.permute.xlu0 0
    %664 = vperm.xlu0 %663, %v651
    %v665 = vpop.permute.xlu0 %664
    %666 = vset.pattern.permute.xlu0 0
    %667 = vperm.xlu0 %666, %v652
    %v668 = vpop.permute.xlu0 %667
    %669 = vset.pattern.permute.xlu0 0
    %670 = vperm.xlu0 %669, %v653
    %v671 = vpop.permute.xlu0 %670
    %672 = vset.pattern.permute.xlu0 0
    %673 = vperm.xlu0 %672, %v654
    %v674 = vpop.permute.xlu0 %673
    %675 = vset.pattern.permute.xlu0 0
    %676 = vperm.xlu0 %675, %v655
    %v677 = vpop.permute.xlu0 %676
    %678 = vset.pattern.permute.xlu0 0
    %679 = vperm.xlu0 %678, %v656
    %v680 = vpop.permute.xlu0 %679
    %vm681 = vcmp.eq.s32.totalorder %v659, 1
    %vm682 = vcmp.eq.s32.totalorder %v662, 1
    %vm683 = vcmp.eq.s32.totalorder %v665, 1
    %vm684 = vcmp.eq.s32.totalorder %v668, 1
    %vm685 = vcmp.eq.s32.totalorder %v671, 1
    %vm686 = vcmp.eq.s32.totalorder %v674, 1
    %vm687 = vcmp.eq.s32.totalorder %v677, 1
    %vm688 = vcmp.eq.s32.totalorder %v680, 1
    %v689 = vsel %vm681, %v639, %v623
    %v690 = vsel %vm682, %v640, %v624
    %v691 = vsel %vm683, %v639, %v625
    %v692 = vsel %vm684, %v640, %v626
    %v693 = vsel %vm685, %v639, %v627
    %v694 = vsel %vm686, %v640, %v628
    %v695 = vsel %vm687, %v639, %v629
    %v696 = vsel %vm688, %v640, %v630
    %s697 = scalar_lea.vmem [#allocation2], 160
    %v698 = vld [vmem:[%s697] sm:$0xff]
    %v699 = vld [vmem:[%s697 + $0x8] sm:$0xff]
    %s700 = scalar_lea.vmem %s2, 10
    %v701 = vld [vmem:[%s700] sm:$0x1]
    %v703 = vperm.slane %v701, 0
    %v705 = vadd.f32 %v698, %v703
    %v706 = vadd.f32 %v699, %v703
    %vm707 = vcmp.eq.s32.totalorder %v31, 10
    %vm708 = vcmp.eq.s32.totalorder %v32, 10
    %vm709 = vcmp.eq.s32.totalorder %v33, 10
    %vm710 = vcmp.eq.s32.totalorder %v34, 10
    %vm711 = vcmp.eq.s32.totalorder %v35, 10
    %vm712 = vcmp.eq.s32.totalorder %v36, 10
    %vm713 = vcmp.eq.s32.totalorder %v37, 10
    %vm714 = vcmp.eq.s32.totalorder %v38, 10
    %v715 = vsel %vm707, 1, 0
    %v716 = vsel %vm708, 1, 0
    %v717 = vsel %vm709, 1, 0
    %v718 = vsel %vm710, 1, 0
    %v719 = vsel %vm711, 1, 0
    %v720 = vsel %vm712, 1, 0
    %v721 = vsel %vm713, 1, 0
    %v722 = vsel %vm714, 1, 0
    %723 = vset.pattern.permute.xlu0 0
    %724 = vperm.xlu0 %723, %v715
    %v725 = vpop.permute.xlu0 %724
    %726 = vset.pattern.permute.xlu0 0
    %727 = vperm.xlu0 %726, %v716
    %v728 = vpop.permute.xlu0 %727
    %729 = vset.pattern.permute.xlu0 0
    %730 = vperm.xlu0 %729, %v717
    %v731 = vpop.permute.xlu0 %730
    %732 = vset.pattern.permute.xlu0 0
    %733 = vperm.xlu0 %732, %v718
    %v734 = vpop.permute.xlu0 %733
    %735 = vset.pattern.permute.xlu0 0
    %736 = vperm.xlu0 %735, %v719
    %v737 = vpop.permute.xlu0 %736
    %738 = vset.pattern.permute.xlu0 0
    %739 = vperm.xlu0 %738, %v720
    %v740 = vpop.permute.xlu0 %739
    %741 = vset.pattern.permute.xlu0 0
    %742 = vperm.xlu0 %741, %v721
    %v743 = vpop.permute.xlu0 %742
    %744 = vset.pattern.permute.xlu0 0
    %745 = vperm.xlu0 %744, %v722
    %v746 = vpop.permute.xlu0 %745
    %vm747 = vcmp.eq.s32.totalorder %v725, 1
    %vm748 = vcmp.eq.s32.totalorder %v728, 1
    %vm749 = vcmp.eq.s32.totalorder %v731, 1
    %vm750 = vcmp.eq.s32.totalorder %v734, 1
    %vm751 = vcmp.eq.s32.totalorder %v737, 1
    %vm752 = vcmp.eq.s32.totalorder %v740, 1
    %vm753 = vcmp.eq.s32.totalorder %v743, 1
    %vm754 = vcmp.eq.s32.totalorder %v746, 1
    %v755 = vsel %vm747, %v705, %v689
    %v756 = vsel %vm748, %v706, %v690
    %v757 = vsel %vm749, %v705, %v691
    %v758 = vsel %vm750, %v706, %v692
    %v759 = vsel %vm751, %v705, %v693
    %v760 = vsel %vm752, %v706, %v694
    %v761 = vsel %vm753, %v705, %v695
    %v762 = vsel %vm754, %v706, %v696
    %s763 = scalar_lea.vmem [#allocation2], 176
    %v764 = vld [vmem:[%s763] sm:$0xff]
    %v765 = vld [vmem:[%s763 + $0x8] sm:$0xff]
    %s766 = scalar_lea.vmem %s2, 11
    %v767 = vld [vmem:[%s766] sm:$0x1]
    %v769 = vperm.slane %v767, 0
    %v771 = vadd.f32 %v764, %v769
    %v772 = vadd.f32 %v765, %v769
    %vm773 = vcmp.eq.s32.totalorder %v31, 11
    %vm774 = vcmp.eq.s32.totalorder %v32, 11
    %vm775 = vcmp.eq.s32.totalorder %v33, 11
    %vm776 = vcmp.eq.s32.totalorder %v34, 11
    %vm777 = vcmp.eq.s32.totalorder %v35, 11
    %vm778 = vcmp.eq.s32.totalorder %v36, 11
    %vm779 = vcmp.eq.s32.totalorder %v37, 11
    %vm780 = vcmp.eq.s32.totalorder %v38, 11
    %v781 = vsel %vm773, 1, 0
    %v782 = vsel %vm774, 1, 0
    %v783 = vsel %vm775, 1, 0
    %v784 = vsel %vm776, 1, 0
    %v785 = vsel %vm777, 1, 0
    %v786 = vsel %vm778, 1, 0
    %v787 = vsel %vm779, 1, 0
    %v788 = vsel %vm780, 1, 0
    %789 = vset.pattern.permute.xlu0 0
    %790 = vperm.xlu0 %789, %v781
    %v791 = vpop.permute.xlu0 %790
    %792 = vset.pattern.permute.xlu0 0
    %793 = vperm.xlu0 %792, %v782
    %v794 = vpop.permute.xlu0 %793
    %795 = vset.pattern.permute.xlu0 0
    %796 = vperm.xlu0 %795, %v783
    %v797 = vpop.permute.xlu0 %796
    %798 = vset.pattern.permute.xlu0 0
    %799 = vperm.xlu0 %798, %v784
    %v800 = vpop.permute.xlu0 %799
    %801 = vset.pattern.permute.xlu0 0
    %802 = vperm.xlu0 %801, %v785
    %v803 = vpop.permute.xlu0 %802
    %804 = vset.pattern.permute.xlu0 0
    %805 = vperm.xlu0 %804, %v786
    %v806 = vpop.permute.xlu0 %805
    %807 = vset.pattern.permute.xlu0 0
    %808 = vperm.xlu0 %807, %v787
    %v809 = vpop.permute.xlu0 %808
    %810 = vset.pattern.permute.xlu0 0
    %811 = vperm.xlu0 %810, %v788
    %v812 = vpop.permute.xlu0 %811
    %vm813 = vcmp.eq.s32.totalorder %v791, 1
    %vm814 = vcmp.eq.s32.totalorder %v794, 1
    %vm815 = vcmp.eq.s32.totalorder %v797, 1
    %vm816 = vcmp.eq.s32.totalorder %v800, 1
    %vm817 = vcmp.eq.s32.totalorder %v803, 1
    %vm818 = vcmp.eq.s32.totalorder %v806, 1
    %vm819 = vcmp.eq.s32.totalorder %v809, 1
    %vm820 = vcmp.eq.s32.totalorder %v812, 1
    %v821 = vsel %vm813, %v771, %v755
    %v822 = vsel %vm814, %v772, %v756
    %v823 = vsel %vm815, %v771, %v757
    %v824 = vsel %vm816, %v772, %v758
    %v825 = vsel %vm817, %v771, %v759
    %v826 = vsel %vm818, %v772, %v760
    %v827 = vsel %vm819, %v771, %v761
    %v828 = vsel %vm820, %v772, %v762
    %s829 = scalar_lea.vmem [#allocation2], 192
    %v830 = vld [vmem:[%s829] sm:$0xff]
    %v831 = vld [vmem:[%s829 + $0x8] sm:$0xff]
    %s832 = scalar_lea.vmem %s2, 12
    %v833 = vld [vmem:[%s832] sm:$0x1]
    %v835 = vperm.slane %v833, 0
    %v837 = vadd.f32 %v830, %v835
    %v838 = vadd.f32 %v831, %v835
    %vm839 = vcmp.eq.s32.totalorder %v31, 12
    %vm840 = vcmp.eq.s32.totalorder %v32, 12
    %vm841 = vcmp.eq.s32.totalorder %v33, 12
    %vm842 = vcmp.eq.s32.totalorder %v34, 12
    %vm843 = vcmp.eq.s32.totalorder %v35, 12
    %vm844 = vcmp.eq.s32.totalorder %v36, 12
    %vm845 = vcmp.eq.s32.totalorder %v37, 12
    %vm846 = vcmp.eq.s32.totalorder %v38, 12
    %v847 = vsel %vm839, 1, 0
    %v848 = vsel %vm840, 1, 0
    %v849 = vsel %vm841, 1, 0
    %v850 = vsel %vm842, 1, 0
    %v851 = vsel %vm843, 1, 0
    %v852 = vsel %vm844, 1, 0
    %v853 = vsel %vm845, 1, 0
    %v854 = vsel %vm846, 1, 0
    %855 = vset.pattern.permute.xlu0 0
    %856 = vperm.xlu0 %855, %v847
    %v857 = vpop.permute.xlu0 %856
    %858 = vset.pattern.permute.xlu0 0
    %859 = vperm.xlu0 %858, %v848
    %v860 = vpop.permute.xlu0 %859
    %861 = vset.pattern.permute.xlu0 0
    %862 = vperm.xlu0 %861, %v849
    %v863 = vpop.permute.xlu0 %862
    %864 = vset.pattern.permute.xlu0 0
    %865 = vperm.xlu0 %864, %v850
    %v866 = vpop.permute.xlu0 %865
    %867 = vset.pattern.permute.xlu0 0
    %868 = vperm.xlu0 %867, %v851
    %v869 = vpop.permute.xlu0 %868
    %870 = vset.pattern.permute.xlu0 0
    %871 = vperm.xlu0 %870, %v852
    %v872 = vpop.permute.xlu0 %871
    %873 = vset.pattern.permute.xlu0 0
    %874 = vperm.xlu0 %873, %v853
    %v875 = vpop.permute.xlu0 %874
    %876 = vset.pattern.permute.xlu0 0
    %877 = vperm.xlu0 %876, %v854
    %v878 = vpop.permute.xlu0 %877
    %vm879 = vcmp.eq.s32.totalorder %v857, 1
    %vm880 = vcmp.eq.s32.totalorder %v860, 1
    %vm881 = vcmp.eq.s32.totalorder %v863, 1
    %vm882 = vcmp.eq.s32.totalorder %v866, 1
    %vm883 = vcmp.eq.s32.totalorder %v869, 1
    %vm884 = vcmp.eq.s32.totalorder %v872, 1
    %vm885 = vcmp.eq.s32.totalorder %v875, 1
    %vm886 = vcmp.eq.s32.totalorder %v878, 1
    %v887 = vsel %vm879, %v837, %v821
    %v888 = vsel %vm880, %v838, %v822
    %v889 = vsel %vm881, %v837, %v823
    %v890 = vsel %vm882, %v838, %v824
    %v891 = vsel %vm883, %v837, %v825
    %v892 = vsel %vm884, %v838, %v826
    %v893 = vsel %vm885, %v837, %v827
    %v894 = vsel %vm886, %v838, %v828
    %s895 = scalar_lea.vmem [#allocation2], 208
    %v896 = vld [vmem:[%s895] sm:$0xff]
    %v897 = vld [vmem:[%s895 + $0x8] sm:$0xff]
    %s898 = scalar_lea.vmem %s2, 13
    %v899 = vld [vmem:[%s898] sm:$0x1]
    %v901 = vperm.slane %v899, 0
    %v903 = vadd.f32 %v896, %v901
    %v904 = vadd.f32 %v897, %v901
    %vm905 = vcmp.eq.s32.totalorder %v31, 13
    %vm906 = vcmp.eq.s32.totalorder %v32, 13
    %vm907 = vcmp.eq.s32.totalorder %v33, 13
    %vm908 = vcmp.eq.s32.totalorder %v34, 13
    %vm909 = vcmp.eq.s32.totalorder %v35, 13
    %vm910 = vcmp.eq.s32.totalorder %v36, 13
    %vm911 = vcmp.eq.s32.totalorder %v37, 13
    %vm912 = vcmp.eq.s32.totalorder %v38, 13
    %v913 = vsel %vm905, 1, 0
    %v914 = vsel %vm906, 1, 0
    %v915 = vsel %vm907, 1, 0
    %v916 = vsel %vm908, 1, 0
    %v917 = vsel %vm909, 1, 0
    %v918 = vsel %vm910, 1, 0
    %v919 = vsel %vm911, 1, 0
    %v920 = vsel %vm912, 1, 0
    %921 = vset.pattern.permute.xlu0 0
    %922 = vperm.xlu0 %921, %v913
    %v923 = vpop.permute.xlu0 %922
    %924 = vset.pattern.permute.xlu0 0
    %925 = vperm.xlu0 %924, %v914
    %v926 = vpop.permute.xlu0 %925
    %927 = vset.pattern.permute.xlu0 0
    %928 = vperm.xlu0 %927, %v915
    %v929 = vpop.permute.xlu0 %928
    %930 = vset.pattern.permute.xlu0 0
    %931 = vperm.xlu0 %930, %v916
    %v932 = vpop.permute.xlu0 %931
    %933 = vset.pattern.permute.xlu0 0
    %934 = vperm.xlu0 %933, %v917
    %v935 = vpop.permute.xlu0 %934
    %936 = vset.pattern.permute.xlu0 0
    %937 = vperm.xlu0 %936, %v918
    %v938 = vpop.permute.xlu0 %937
    %939 = vset.pattern.permute.xlu0 0
    %940 = vperm.xlu0 %939, %v919
    %v941 = vpop.permute.xlu0 %940
    %942 = vset.pattern.permute.xlu0 0
    %943 = vperm.xlu0 %942, %v920
    %v944 = vpop.permute.xlu0 %943
    %vm945 = vcmp.eq.s32.totalorder %v923, 1
    %vm946 = vcmp.eq.s32.totalorder %v926, 1
    %vm947 = vcmp.eq.s32.totalorder %v929, 1
    %vm948 = vcmp.eq.s32.totalorder %v932, 1
    %vm949 = vcmp.eq.s32.totalorder %v935, 1
    %vm950 = vcmp.eq.s32.totalorder %v938, 1
    %vm951 = vcmp.eq.s32.totalorder %v941, 1
    %vm952 = vcmp.eq.s32.totalorder %v944, 1
    %v953 = vsel %vm945, %v903, %v887
    %v954 = vsel %vm946, %v904, %v888
    %v955 = vsel %vm947, %v903, %v889
    %v956 = vsel %vm948, %v904, %v890
    %v957 = vsel %vm949, %v903, %v891
    %v958 = vsel %vm950, %v904, %v892
    %v959 = vsel %vm951, %v903, %v893
    %v960 = vsel %vm952, %v904, %v894
    %s961 = scalar_lea.vmem [#allocation2], 224
    %v962 = vld [vmem:[%s961] sm:$0xff]
    %v963 = vld [vmem:[%s961 + $0x8] sm:$0xff]
    %s964 = scalar_lea.vmem %s2, 14
    %v965 = vld [vmem:[%s964] sm:$0x1]
    %v967 = vperm.slane %v965, 0
    %v969 = vadd.f32 %v962, %v967
    %v970 = vadd.f32 %v963, %v967
    %vm971 = vcmp.eq.s32.totalorder %v31, 14
    %vm972 = vcmp.eq.s32.totalorder %v32, 14
    %vm973 = vcmp.eq.s32.totalorder %v33, 14
    %vm974 = vcmp.eq.s32.totalorder %v34, 14
    %vm975 = vcmp.eq.s32.totalorder %v35, 14
    %vm976 = vcmp.eq.s32.totalorder %v36, 14
    %vm977 = vcmp.eq.s32.totalorder %v37, 14
    %vm978 = vcmp.eq.s32.totalorder %v38, 14
    %v979 = vsel %vm971, 1, 0
    %v980 = vsel %vm972, 1, 0
    %v981 = vsel %vm973, 1, 0
    %v982 = vsel %vm974, 1, 0
    %v983 = vsel %vm975, 1, 0
    %v984 = vsel %vm976, 1, 0
    %v985 = vsel %vm977, 1, 0
    %v986 = vsel %vm978, 1, 0
    %987 = vset.pattern.permute.xlu0 0
    %988 = vperm.xlu0 %987, %v979
    %v989 = vpop.permute.xlu0 %988
    %990 = vset.pattern.permute.xlu0 0
    %991 = vperm.xlu0 %990, %v980
    %v992 = vpop.permute.xlu0 %991
    %993 = vset.pattern.permute.xlu0 0
    %994 = vperm.xlu0 %993, %v981
    %v995 = vpop.permute.xlu0 %994
    %996 = vset.pattern.permute.xlu0 0
    %997 = vperm.xlu0 %996, %v982
    %v998 = vpop.permute.xlu0 %997
    %999 = vset.pattern.permute.xlu0 0
    %1000 = vperm.xlu0 %999, %v983
    %v1001 = vpop.permute.xlu0 %1000
    %1002 = vset.pattern.permute.xlu0 0
    %1003 = vperm.xlu0 %1002, %v984
    %v1004 = vpop.permute.xlu0 %1003
    %1005 = vset.pattern.permute.xlu0 0
    %1006 = vperm.xlu0 %1005, %v985
    %v1007 = vpop.permute.xlu0 %1006
    %1008 = vset.pattern.permute.xlu0 0
    %1009 = vperm.xlu0 %1008, %v986
    %v1010 = vpop.permute.xlu0 %1009
    %vm1011 = vcmp.eq.s32.totalorder %v989, 1
    %vm1012 = vcmp.eq.s32.totalorder %v992, 1
    %vm1013 = vcmp.eq.s32.totalorder %v995, 1
    %vm1014 = vcmp.eq.s32.totalorder %v998, 1
    %vm1015 = vcmp.eq.s32.totalorder %v1001, 1
    %vm1016 = vcmp.eq.s32.totalorder %v1004, 1
    %vm1017 = vcmp.eq.s32.totalorder %v1007, 1
    %vm1018 = vcmp.eq.s32.totalorder %v1010, 1
    %v1019 = vsel %vm1011, %v969, %v953
    %v1020 = vsel %vm1012, %v970, %v954
    %v1021 = vsel %vm1013, %v969, %v955
    %v1022 = vsel %vm1014, %v970, %v956
    %v1023 = vsel %vm1015, %v969, %v957
    %v1024 = vsel %vm1016, %v970, %v958
    %v1025 = vsel %vm1017, %v969, %v959
    %v1026 = vsel %vm1018, %v970, %v960
    %s1027 = scalar_lea.vmem [#allocation2], 240
    %v1028 = vld [vmem:[%s1027] sm:$0xff]
    %v1029 = vld [vmem:[%s1027 + $0x8] sm:$0xff]
    %s1030 = scalar_lea.vmem %s2, 15
    %v1031 = vld [vmem:[%s1030] sm:$0x1]
    %v1033 = vperm.slane %v1031, 0
    %v1035 = vadd.f32 %v1028, %v1033
    %v1036 = vadd.f32 %v1029, %v1033
    %vm1037 = vcmp.eq.s32.totalorder %v31, 15
    %vm1038 = vcmp.eq.s32.totalorder %v32, 15
    %vm1039 = vcmp.eq.s32.totalorder %v33, 15
    %vm1040 = vcmp.eq.s32.totalorder %v34, 15
    %vm1041 = vcmp.eq.s32.totalorder %v35, 15
    %vm1042 = vcmp.eq.s32.totalorder %v36, 15
    %vm1043 = vcmp.eq.s32.totalorder %v37, 15
    %vm1044 = vcmp.eq.s32.totalorder %v38, 15
    %v1045 = vsel %vm1037, 1, 0
    %v1046 = vsel %vm1038, 1, 0
    %v1047 = vsel %vm1039, 1, 0
    %v1048 = vsel %vm1040, 1, 0
    %v1049 = vsel %vm1041, 1, 0
    %v1050 = vsel %vm1042, 1, 0
    %v1051 = vsel %vm1043, 1, 0
    %v1052 = vsel %vm1044, 1, 0
    %1053 = vset.pattern.permute.xlu0 0
    %1054 = vperm.xlu0 %1053, %v1045
    %v1055 = vpop.permute.xlu0 %1054
    %1056 = vset.pattern.permute.xlu0 0
    %1057 = vperm.xlu0 %1056, %v1046
    %v1058 = vpop.permute.xlu0 %1057
    %1059 = vset.pattern.permute.xlu0 0
    %1060 = vperm.xlu0 %1059, %v1047
    %v1061 = vpop.permute.xlu0 %1060
    %1062 = vset.pattern.permute.xlu0 0
    %1063 = vperm.xlu0 %1062, %v1048
    %v1064 = vpop.permute.xlu0 %1063
    %1065 = vset.pattern.permute.xlu0 0
    %1066 = vperm.xlu0 %1065, %v1049
    %v1067 = vpop.permute.xlu0 %1066
    %1068 = vset.pattern.permute.xlu0 0
    %1069 = vperm.xlu0 %1068, %v1050
    %v1070 = vpop.permute.xlu0 %1069
    %1071 = vset.pattern.permute.xlu0 0
    %1072 = vperm.xlu0 %1071, %v1051
    %v1073 = vpop.permute.xlu0 %1072
    %1074 = vset.pattern.permute.xlu0 0
    %1075 = vperm.xlu0 %1074, %v1052
    %v1076 = vpop.permute.xlu0 %1075
    %vm1077 = vcmp.eq.s32.totalorder %v1055, 1
    %vm1078 = vcmp.eq.s32.totalorder %v1058, 1
    %vm1079 = vcmp.eq.s32.totalorder %v1061, 1
    %vm1080 = vcmp.eq.s32.totalorder %v1064, 1
    %vm1081 = vcmp.eq.s32.totalorder %v1067, 1
    %vm1082 = vcmp.eq.s32.totalorder %v1070, 1
    %vm1083 = vcmp.eq.s32.totalorder %v1073, 1
    %vm1084 = vcmp.eq.s32.totalorder %v1076, 1
    %v1085 = vsel %vm1077, %v1035, %v1019
    %v1086 = vsel %vm1078, %v1036, %v1020
    %v1087 = vsel %vm1079, %v1035, %v1021
    %v1088 = vsel %vm1080, %v1036, %v1022
    %v1089 = vsel %vm1081, %v1035, %v1023
    %v1090 = vsel %vm1082, %v1036, %v1024
    %v1091 = vsel %vm1083, %v1035, %v1025
    %v1092 = vsel %vm1084, %v1036, %v1026
    %1093 = vst [vmem:[#allocation5] sm:$0xff] %v1085
    %1094 = vst [vmem:[#allocation5 + $0x8] sm:$0xff] %v1086
    %1095 = vst [vmem:[#allocation5 + $0x10] sm:$0xff] %v1087
    %1096 = vst [vmem:[#allocation5 + $0x18] sm:$0xff] %v1088
    %1097 = vst [vmem:[#allocation5 + $0x20] sm:$0xff] %v1089
    %1098 = vst [vmem:[#allocation5 + $0x28] sm:$0xff] %v1090
    %1099 = vst [vmem:[#allocation5 + $0x30] sm:$0xff] %v1091
    %1100 = vst [vmem:[#allocation5 + $0x38] sm:$0xff] %v1092
    // Predicated region
    $region18: #{tpu_custom_call.1} parent=1 // pred_check
      _
    $region19: #{tpu_custom_call.1} parent=1 // pred_check_branch
      %1102 = sbr.rel (0) target = $region21
    $region20: #{tpu_custom_call.1} parent=1 // pred_region
      %1104 = vsyncadd [#allocation4], 0
      %s1105 = sshll.u32 [#allocation5], 4
      %s1106 = int_to_ptr.vmem [resolvable:$true] %s1105
      %s1107 = sshll.u32 %s3, 4
      %s1108 = int_to_ptr.hbm [resolvable:$true] %s1107
      %1113 = dma.vmem_to_hbm [thread:$0]  %s1106, 1024, %s1108, [#allocation4], 128, 128, 8
    $region21: #{tpu_custom_call.1} parent=1 // pred_fallthru
      _
    // Predicated region
    $region22: #{tpu_custom_call.1} parent=1 // pred_check
      _
    $region23: #{tpu_custom_call.1} parent=1 // pred_check_branch
      %1115 = sbr.rel (0) target = $region25
    $region24: #{tpu_custom_call.1} parent=1 // pred_region
      %1117 = dma.done [#allocation4], 1024
    $region25: #{tpu_custom_call.1} parent=1 // pred_fallthru
      _
    %1118 = vsyncpa [#allocation3], 1
    %1119 = vsyncpa [#allocation4], 1

</llo_original>
